<compile_context>
chip_gen: v6e
topology: v6e:2x2x1
jax: 0.10.0
libtpu: 0.0.40
codegen_flags: <defaults>
</compile_context>

<pallas_src>
import functools
import math

import jax
import jax.numpy as jnp
from jax.experimental import pallas as pl
from jax.experimental.pallas import tpu as pltpu


def _decoder_kernel(num_layers, H, *refs):
    """Single-invocation kernel (grid=()) -- everything fits in VMEM at these sizes.

    ref order:
      ids(B,) i32 SMEM, prev_hidden(L,B,H), enc(B,S,H), mask(B,S),
      emb(V,E), W_h(H,H), W_e(H,H), attn_b(1,H), v(1,H),
      [ per GRU layer l: w_ih(in_l,3H), w_hh(H,3H), b_ih(1,3H), b_hh(1,3H) ],
      fc_w(E+2H,Vpad), fc_b(1,Vpad),
      outputs: out(B,Vpad), hidden(L,B,H), attn(B,S)
    """
    n_in = 9 + 4 * num_layers + 2
    (ids_ref, prev_h_ref, enc_ref, mask_ref,
     emb_ref, wh_ref, we_ref, attn_b_ref, v_ref) = refs[:9]
    layer_refs = refs[9:9 + 4 * num_layers]
    fc_w_ref, fc_b_ref = refs[9 + 4 * num_layers:n_in]
    out_ref, hidden_ref, attn_ref = refs[n_in:]

    B, S, _ = enc_ref.shape
    f32 = jnp.float32

    # ---- embedding: SMEM scalar ids -> dynamic row gather (no one-hot matmul) ----
    # TODO(synk): torch.nn.Embedding raises on out-of-range ids; gather just reads that row.
    rows = [emb_ref[pl.ds(ids_ref[b], 1), :] for b in range(B)]   # each (1, E)
    embedded = jnp.concatenate(rows, axis=0)                      # (B, E)
    # dropout: eval-mode identity

    # ---- attention: relu(enc @ W_e + h_top @ W_h + b), no (B,S,2H) materialization ----
    h_top = prev_h_ref[num_layers - 1]                            # (B, H)
    enc = enc_ref[...]                                            # (B, S, H)
    h_part = jnp.dot(h_top, wh_ref[...], preferred_element_type=f32) + attn_b_ref[...]   # (B, H)
    e_part = jnp.dot(enc.reshape(B * S, H), we_ref[...], preferred_element_type=f32)     # (B*S, H)
    energy = jnp.maximum(e_part.reshape(B, S, H) + h_part[:, None, :], 0.0)              # (B, S, H)
    e = jnp.sum(energy * v_ref[...], axis=-1)                     # (B, S)
    e = jnp.where(mask_ref[...] > 0, e, f32(-1e30))               # finite sentinel: no NaN hazard
    m = jnp.max(e, axis=-1, keepdims=True)
    p = jnp.exp(e - m)
    attn = p * pl.reciprocal(jnp.sum(p, axis=-1, keepdims=True), approx=True)  # (B, S)
    attn_ref[...] = attn

    # ---- context = sum_s attn[b,s] * enc[b,s,:]  (VPU mul + sublane reduce, no bmm) ----
    context = jnp.sum(attn[:, :, None] * enc, axis=1)             # (B, H)

    # ---- GRU, seq_len = 1, layers unrolled; fused gate matmuls (r,z,n order) ----
    xc = jnp.concatenate([embedded, context], axis=-1)            # (B, E+H)
    x = xc
    for l in range(num_layers):
        w_ih, w_hh, b_ih, b_hh = layer_refs[4 * l:4 * l + 4]
        h_prev = prev_h_ref[l]                                    # (B, H)
        gi = jnp.dot(x, w_ih[...], preferred_element_type=f32) + b_ih[...]       # (B, 3H)
        gh = jnp.dot(h_prev, w_hh[...], preferred_element_type=f32) + b_hh[...]  # (B, 3H)
        r = jax.nn.sigmoid(gi[:, 0:H] + gh[:, 0:H])
        z = jax.nn.sigmoid(gi[:, H:2 * H] + gh[:, H:2 * H])
        n = jnp.tanh(gi[:, 2 * H:3 * H] + r * gh[:, 2 * H:3 * H])  # b_hh_n inside r* (torch)
        h_new = (1.0 - z) * n + z * h_prev
        hidden_ref[l] = h_new
        x = h_new                                                 # inter-layer dropout: eval identity

    # ---- final projection; fc rows were reordered to [emb|ctx|gru] so we reuse xc ----
    fc_in = jnp.concatenate([xc, x], axis=-1)                     # (B, E+2H)
    out_ref[...] = (jnp.dot(fc_in, fc_w_ref[...], preferred_element_type=f32)
                    + fc_b_ref[...])                              # (B, Vpad), lane-dense store
    # TODO(synk): for large V / v7x (64 MiB VMEM), tile the fc over vocab with a grid axis
    #   marked "parallel" and keep emb/fc_w HBM-resident; for autoregressive decoding, fuse
    #   T steps into one pallas_call with hidden carried in VMEM scratch.


def decoder_forward(params, input_ids, prev_hidden, encoder_outputs, src_mask):
    """Matches Decoder.forward semantics (eval mode).

    input_ids: (B,) int, prev_hidden: (L,B,H), encoder_outputs: (S,B,H), src_mask: (S,B) bool.
    Returns: output (B, V), hidden (L, B, H), attn_weights (B, 1, S).
    """
    L, B, H = prev_hidden.shape
    S = encoder_outputs.shape[0]
    V, E = params["embedding"].shape
    Vpad = ((V + 127) // 128) * 128

    enc_bsh = jnp.transpose(encoder_outputs, (1, 0, 2)).astype(jnp.float32)  # (B, S, H)
    mask_bs = jnp.transpose(src_mask, (1, 0)).astype(jnp.float32)            # (B, S)
    ids = input_ids.astype(jnp.int32)                                        # (B,)

    # attn linear split: cat([h, enc]) @ W == h @ W[:H] + enc @ W[H:]
    wh = params["attn_w"][:H]                                                # (H, H)
    we = params["attn_w"][H:]                                                # (H, H)

    # fc rows reordered [emb|gru|ctx] -> [emb|ctx|gru]; vocab padded to multiple of 128.
    fc_w = params["fc_w"]
    fc_w_r = jnp.concatenate([fc_w[:E], fc_w[E + H:E + 2 * H], fc_w[E:E + H]], axis=0)
    fc_w_p = jnp.pad(fc_w_r, ((0, 0), (0, Vpad - V)))
    fc_b_p = jnp.pad(params["fc_b"], ((0, 0), (0, Vpad - V)))

    inputs = [ids, prev_hidden.astype(jnp.float32), enc_bsh, mask_bs,
              params["embedding"], wh, we, params["attn_b"], params["v"]]
    for l in range(L):
        inputs += [params[f"w_ih_{l}"], params[f"w_hh_{l}"],
                   params[f"b_ih_{l}"], params[f"b_hh_{l}"]]
    inputs += [fc_w_p, fc_b_p]

    vmem = lambda: pl.BlockSpec(memory_space=pltpu.MemorySpace.VMEM)
    smem = pl.BlockSpec(memory_space=pltpu.MemorySpace.SMEM)
    in_specs = [smem] + [vmem() for _ in inputs[1:]]

    kernel = functools.partial(_decoder_kernel, L, H)
    out_p, hidden, attn = pl.pallas_call(
        kernel,
        out_shape=(jax.ShapeDtypeStruct((B, Vpad), jnp.float32),
                   jax.ShapeDtypeStruct((L, B, H), jnp.float32),
                   jax.ShapeDtypeStruct((B, S), jnp.float32)),
        in_specs=in_specs,
        out_specs=(vmem(), vmem(), vmem()),
    )(*inputs)
    return out_p[:, :V], hidden, attn[:, None, :]


def init_params(key, V, E, H, L):
    """Deterministic synthetic parameters, PyTorch init ranges, pre-transposed to (in, out).

    GRU weights stored fused: w_ih_l (in_l, 3H), w_hh_l (H, 3H), biases (1, 3H),
    columns in PyTorch gate order (r, z, n).
    """
    n_keys = 6 + 4 * L
    ks = iter(jax.random.split(key, n_keys))
    u = lambda k, shape, s: jax.random.uniform(k, shape, jnp.float32, -s, s)

    p = {}
    p["embedding"] = jax.random.normal(next(ks), (V, E), jnp.float32) * 0.1

    s_attn = 1.0 / math.sqrt(2 * H)
    p["attn_w"] = jnp.transpose(u(next(ks), (H, 2 * H), s_attn))          # (2H, H)
    p["attn_b"] = u(next(ks), (1, H), s_attn)
    p["v"] = u(next(ks), (1, H), 1.0 / math.sqrt(H))

    s_gru = 1.0 / math.sqrt(H)
    for l in range(L):
        in_l = (E + H) if l == 0 else H
        p[f"w_ih_{l}"] = jnp.transpose(u(next(ks), (3 * H, in_l), s_gru))  # (in_l, 3H)
        p[f"w_hh_{l}"] = jnp.transpose(u(next(ks), (3 * H, H), s_gru))     # (H, 3H)
        p[f"b_ih_{l}"] = u(next(ks), (3 * H,), s_gru).reshape(1, 3 * H)
        p[f"b_hh_{l}"] = u(next(ks), (3 * H,), s_gru).reshape(1, 3 * H)

    s_fc = 1.0 / math.sqrt(E + 2 * H)
    p["fc_w"] = jnp.transpose(u(next(ks), (V, E + 2 * H), s_fc))           # (E+2H, V), rows [emb|gru|ctx]
    p["fc_b"] = u(next(ks), (1, V), s_fc)
    return p


def decoder_reference(params, input_ids, prev_hidden, encoder_outputs, src_mask):
    """Pure-JAX reference mirroring the PyTorch forward (eval mode)."""
    L, B, H = prev_hidden.shape
    S = encoder_outputs.shape[0]
    emb = params["embedding"][input_ids]                                   # (B, E)
    h_top = prev_hidden[-1]
    enc = jnp.transpose(encoder_outputs, (1, 0, 2))                        # (B, S, H)
    cat = jnp.concatenate([jnp.broadcast_to(h_top[:, None, :], (B, S, H)), enc], -1)
    energy = jax.nn.relu(cat @ params["attn_w"] + params["attn_b"][0])
    e = jnp.einsum("bsh,h->bs", energy, params["v"][0])
    e = jnp.where(jnp.transpose(src_mask), e, -jnp.inf)
    attn = jax.nn.softmax(e, axis=-1)
    context = jnp.einsum("bs,bsh->bh", attn, enc)
    x = jnp.concatenate([emb, context], -1)
    hidden_new = []
    for l in range(L):
        wih, whh = params[f"w_ih_{l}"], params[f"w_hh_{l}"]
        bih, bhh = params[f"b_ih_{l}"][0], params[f"b_hh_{l}"][0]
        hp = prev_hidden[l]
        gi = x @ wih + bih
        gh = hp @ whh + bhh
        r = jax.nn.sigmoid(gi[:, :H] + gh[:, :H])
        z = jax.nn.sigmoid(gi[:, H:2 * H] + gh[:, H:2 * H])
        n = jnp.tanh(gi[:, 2 * H:] + r * gh[:, 2 * H:])
        hn = (1.0 - z) * n + z * hp
        hidden_new.append(hn)
        x = hn
    out = jnp.concatenate([emb, x, context], -1) @ params["fc_w"] + params["fc_b"][0]
    return out, jnp.stack(hidden_new), attn[:, None, :]


if __name__ == "__main__":
    B, S, H, E, V, L = 2, 8, 32, 32, 50, 2

    key = jax.random.PRNGKey(0)
    k_par, k_ids, k_h, k_enc = jax.random.split(key, 4)

    params = init_params(k_par, V, E, H, L)
    input_ids = jax.random.randint(k_ids, (B,), 0, V)
    prev_hidden = jax.random.normal(k_h, (L, B, H), jnp.float32)
    encoder_outputs = jax.random.normal(k_enc, (S, B, H), jnp.float32)
    lengths = jnp.array([S, 5], dtype=jnp.int32)
    src_mask = jnp.arange(S)[:, None] < lengths[None, :]                   # (S, B) bool

    out, hidden, attnw = decoder_forward(params, input_ids, prev_hidden,
                                         encoder_outputs, src_mask)
    jax.block_until_ready((out, hidden, attnw))

    out_r, hidden_r, attnw_r = decoder_reference(params, input_ids, prev_hidden,
                                                 encoder_outputs, src_mask)
    assert out.shape == (B, V) and hidden.shape == (L, B, H) and attnw.shape == (B, 1, S)
    assert jnp.allclose(out, out_r, rtol=1e-2, atol=1e-2)
    assert jnp.allclose(hidden, hidden_r, rtol=1e-2, atol=1e-2)
    assert jnp.allclose(attnw, attnw_r, rtol=1e-2, atol=1e-2)

    print("KERNEL_OK")
</pallas_src>

<mosaic_0001>
module attributes {stable_mosaic.version = 11 : i64} {
  func.func @_decoder_kernel(%arg0: memref<2xi32, #tpu.memory_space<smem>>, %arg1: memref<2x2x32xf32, #tpu.memory_space<vmem>>, %arg2: memref<2x8x32xf32, #tpu.memory_space<vmem>>, %arg3: memref<2x8xf32, #tpu.memory_space<vmem>>, %arg4: memref<50x32xf32, #tpu.memory_space<vmem>>, %arg5: memref<32x32xf32, #tpu.memory_space<vmem>>, %arg6: memref<32x32xf32, #tpu.memory_space<vmem>>, %arg7: memref<1x32xf32, #tpu.memory_space<vmem>>, %arg8: memref<1x32xf32, #tpu.memory_space<vmem>>, %arg9: memref<64x96xf32, #tpu.memory_space<vmem>>, %arg10: memref<32x96xf32, #tpu.memory_space<vmem>>, %arg11: memref<1x96xf32, #tpu.memory_space<vmem>>, %arg12: memref<1x96xf32, #tpu.memory_space<vmem>>, %arg13: memref<32x96xf32, #tpu.memory_space<vmem>>, %arg14: memref<32x96xf32, #tpu.memory_space<vmem>>, %arg15: memref<1x96xf32, #tpu.memory_space<vmem>>, %arg16: memref<1x96xf32, #tpu.memory_space<vmem>>, %arg17: memref<96x128xf32, #tpu.memory_space<vmem>>, %arg18: memref<1x128xf32, #tpu.memory_space<vmem>>, %arg19: memref<2x128xf32, #tpu.memory_space<vmem>>, %arg20: memref<2x2x32xf32, #tpu.memory_space<vmem>>, %arg21: memref<2x8xf32, #tpu.memory_space<vmem>>) attributes {dimension_semantics = [], scalar_prefetch = 0 : i64, scratch_operands = 0 : i64, tpu.core_type = #tpu.core_type<tc>} {
    %c0 = arith.constant 0 : index
    %0 = memref.load %arg0[%c0] : memref<2xi32, #tpu.memory_space<smem>>
    %1 = arith.index_cast %0 : i32 to index
    %c0_0 = arith.constant 0 : index
    %2 = vector.load %arg4[%1, %c0_0] : memref<50x32xf32, #tpu.memory_space<vmem>>, vector<1x32xf32>
    %c1 = arith.constant 1 : index
    %3 = memref.load %arg0[%c1] : memref<2xi32, #tpu.memory_space<smem>>
    %4 = arith.index_cast %3 : i32 to index
    %c0_1 = arith.constant 0 : index
    %5 = vector.load %arg4[%4, %c0_1] : memref<50x32xf32, #tpu.memory_space<vmem>>, vector<1x32xf32>
    %6 = tpu.concatenate %2, %5 in 0 : vector<1x32xf32>, vector<1x32xf32> -> vector<2x32xf32>
    %c1_2 = arith.constant 1 : index
    %c0_3 = arith.constant 0 : index
    %c0_4 = arith.constant 0 : index
    %7 = vector.load %arg1[%c1_2, %c0_3, %c0_4] : memref<2x2x32xf32, #tpu.memory_space<vmem>>, vector<1x2x32xf32>
    %8 = vector.shape_cast %7 : vector<1x2x32xf32> to vector<2x32xf32>
    %c0_5 = arith.constant 0 : index
    %c0_6 = arith.constant 0 : index
    %c0_7 = arith.constant 0 : index
    %9 = vector.load %arg2[%c0_5, %c0_6, %c0_7] : memref<2x8x32xf32, #tpu.memory_space<vmem>>, vector<2x8x32xf32>
    %c0_8 = arith.constant 0 : index
    %c0_9 = arith.constant 0 : index
    %10 = vector.load %arg5[%c0_8, %c0_9] : memref<32x32xf32, #tpu.memory_space<vmem>>, vector<32x32xf32>
    %cst = arith.constant dense<0.000000e+00> : vector<2x32xf32>
    %11 = tpu.matmul %8, %10, %cst {dimension_numbers = #tpu.dot_dimension_numbers<[1], [0], [0], [1], [0, 0, 1, 1], [], []>} : vector<2x32xf32>, vector<32x32xf32>, vector<2x32xf32> -> vector<2x32xf32>
    %c0_10 = arith.constant 0 : index
    %c0_11 = arith.constant 0 : index
    %12 = vector.load %arg7[%c0_10, %c0_11] : memref<1x32xf32, #tpu.memory_space<vmem>>, vector<1x32xf32>
    %13 = vector.broadcast %12 : vector<1x32xf32> to vector<2x32xf32>
    %14 = arith.addf %11, %13 : vector<2x32xf32>
    %15 = vector.shape_cast %9 : vector<2x8x32xf32> to vector<16x32xf32>
    %c0_12 = arith.constant 0 : index
    %c0_13 = arith.constant 0 : index
    %16 = vector.load %arg6[%c0_12, %c0_13] : memref<32x32xf32, #tpu.memory_space<vmem>>, vector<32x32xf32>
    %cst_14 = arith.constant dense<0.000000e+00> : vector<16x32xf32>
    %17 = tpu.matmul %15, %16, %cst_14 {dimension_numbers = #tpu.dot_dimension_numbers<[1], [0], [0], [1], [0, 0, 1, 1], [], []>} : vector<16x32xf32>, vector<32x32xf32>, vector<16x32xf32> -> vector<16x32xf32>
    %18 = vector.shape_cast %17 : vector<16x32xf32> to vector<2x8x32xf32>
    %19 = vector.shape_cast %14 : vector<2x32xf32> to vector<2x1x32xf32>
    %20 = vector.broadcast %19 : vector<2x1x32xf32> to vector<2x8x32xf32>
    %21 = arith.addf %18, %20 : vector<2x8x32xf32>
    %cst_15 = arith.constant 0.000000e+00 : f32
    %22 = vector.broadcast %cst_15 : f32 to vector<2x8x32xf32>
    %23 = arith.maximumf %21, %22 : vector<2x8x32xf32>
    %c0_16 = arith.constant 0 : index
    %c0_17 = arith.constant 0 : index
    %24 = vector.load %arg8[%c0_16, %c0_17] : memref<1x32xf32, #tpu.memory_space<vmem>>, vector<1x32xf32>
    %25 = vector.shape_cast %24 : vector<1x32xf32> to vector<1x1x32xf32>
    %26 = vector.broadcast %25 : vector<1x1x32xf32> to vector<2x8x32xf32>
    %27 = arith.mulf %23, %26 : vector<2x8x32xf32>
    %cst_18 = arith.constant dense<0.000000e+00> : vector<2x8xf32>
    %28 = vector.multi_reduction <add>, %27, %cst_18 [2] : vector<2x8x32xf32> to vector<2x8xf32>
    %c0_19 = arith.constant 0 : index
    %c0_20 = arith.constant 0 : index
    %29 = vector.load %arg3[%c0_19, %c0_20] : memref<2x8xf32, #tpu.memory_space<vmem>>, vector<2x8xf32>
    %cst_21 = arith.constant 0.000000e+00 : f32
    %30 = vector.broadcast %cst_21 : f32 to vector<2x8xf32>
    %31 = arith.cmpf ogt, %29, %30 : vector<2x8xf32>
    %cst_22 = arith.constant -1.000000e+30 : f32
    %32 = vector.broadcast %cst_22 : f32 to vector<2x8xf32>
    %33 = arith.select %31, %28, %32 : vector<2x8xi1>, vector<2x8xf32>
    %cst_23 = arith.constant dense<0xFF800000> : vector<2xf32>
    %34 = vector.multi_reduction <maximumf>, %33, %cst_23 [1] : vector<2x8xf32> to vector<2xf32>
    %35 = vector.shape_cast %34 : vector<2xf32> to vector<2x1xf32>
    %36 = vector.broadcast %35 : vector<2x1xf32> to vector<2x8xf32>
    %37 = arith.subf %33, %36 : vector<2x8xf32>
    %38 = math.exp %37 : vector<2x8xf32>
    %cst_24 = arith.constant dense<0.000000e+00> : vector<2xf32>
    %39 = vector.multi_reduction <add>, %38, %cst_24 [1] : vector<2x8xf32> to vector<2xf32>
    %40 = vector.shape_cast %39 : vector<2xf32> to vector<2x1xf32>
    %41 = tpu.reciprocal %40 {approx = true} : vector<2x1xf32> -> vector<2x1xf32>
    %42 = vector.broadcast %41 : vector<2x1xf32> to vector<2x8xf32>
    %43 = arith.mulf %38, %42 : vector<2x8xf32>
    %c0_25 = arith.constant 0 : index
    %c0_26 = arith.constant 0 : index
    %44 = vector.load %arg21[%c0_25, %c0_26] : memref<2x8xf32, #tpu.memory_space<vmem>>, vector<2x8xf32>
    tpu.vector_store %arg21[%c0_25, %c0_26], %43 {strides = array<i32>} : memref<2x8xf32, #tpu.memory_space<vmem>>, vector<2x8xf32>,
    %45 = vector.shape_cast %43 : vector<2x8xf32> to vector<2x8x1xf32>
    %46 = vector.broadcast %45 : vector<2x8x1xf32> to vector<2x8x32xf32>
    %47 = arith.mulf %46, %9 : vector<2x8x32xf32>
    %cst_27 = arith.constant dense<0.000000e+00> : vector<2x32xf32>
    %48 = vector.multi_reduction <add>, %47, %cst_27 [1] : vector<2x8x32xf32> to vector<2x32xf32>
    %49 = tpu.concatenate %6, %48 in 1 : vector<2x32xf32>, vector<2x32xf32> -> vector<2x64xf32>
    %c0_28 = arith.constant 0 : index
    %c0_29 = arith.constant 0 : index
    %c0_30 = arith.constant 0 : index
    %50 = vector.load %arg1[%c0_28, %c0_29, %c0_30] : memref<2x2x32xf32, #tpu.memory_space<vmem>>, vector<1x2x32xf32>
    %51 = vector.shape_cast %50 : vector<1x2x32xf32> to vector<2x32xf32>
    %c0_31 = arith.constant 0 : index
    %c0_32 = arith.constant 0 : index
    %52 = vector.load %arg9[%c0_31, %c0_32] : memref<64x96xf32, #tpu.memory_space<vmem>>, vector<64x96xf32>
    %cst_33 = arith.constant dense<0.000000e+00> : vector<2x96xf32>
    %53 = tpu.matmul %49, %52, %cst_33 {dimension_numbers = #tpu.dot_dimension_numbers<[1], [0], [0], [1], [0, 0, 1, 1], [], []>} : vector<2x64xf32>, vector<64x96xf32>, vector<2x96xf32> -> vector<2x96xf32>
    %c0_34 = arith.constant 0 : index
    %c0_35 = arith.constant 0 : index
    %54 = vector.load %arg11[%c0_34, %c0_35] : memref<1x96xf32, #tpu.memory_space<vmem>>, vector<1x96xf32>
    %55 = vector.broadcast %54 : vector<1x96xf32> to vector<2x96xf32>
    %56 = arith.addf %53, %55 : vector<2x96xf32>
    %c0_36 = arith.constant 0 : index
    %c0_37 = arith.constant 0 : index
    %57 = vector.load %arg10[%c0_36, %c0_37] : memref<32x96xf32, #tpu.memory_space<vmem>>, vector<32x96xf32>
    %cst_38 = arith.constant dense<0.000000e+00> : vector<2x96xf32>
    %58 = tpu.matmul %51, %57, %cst_38 {dimension_numbers = #tpu.dot_dimension_numbers<[1], [0], [0], [1], [0, 0, 1, 1], [], []>} : vector<2x32xf32>, vector<32x96xf32>, vector<2x96xf32> -> vector<2x96xf32>
    %c0_39 = arith.constant 0 : index
    %c0_40 = arith.constant 0 : index
    %59 = vector.load %arg12[%c0_39, %c0_40] : memref<1x96xf32, #tpu.memory_space<vmem>>, vector<1x96xf32>
    %60 = vector.broadcast %59 : vector<1x96xf32> to vector<2x96xf32>
    %61 = arith.addf %58, %60 : vector<2x96xf32>
    %62 = vector.extract_strided_slice %56 {offsets = [0, 0], sizes = [2, 32], strides = [1, 1]} : vector<2x96xf32> to vector<2x32xf32>
    %63 = vector.extract_strided_slice %61 {offsets = [0, 0], sizes = [2, 32], strides = [1, 1]} : vector<2x96xf32> to vector<2x32xf32>
    %64 = arith.addf %62, %63 : vector<2x32xf32>
    %65 = arith.negf %64 : vector<2x32xf32>
    %66 = math.exp %65 : vector<2x32xf32>
    %cst_41 = arith.constant 1.000000e+00 : f32
    %67 = vector.broadcast %cst_41 : f32 to vector<2x32xf32>
    %68 = arith.addf %67, %66 : vector<2x32xf32>
    %69 = arith.divf %67, %68 : vector<2x32xf32>
    %70 = vector.extract_strided_slice %56 {offsets = [0, 32], sizes = [2, 32], strides = [1, 1]} : vector<2x96xf32> to vector<2x32xf32>
    %71 = vector.extract_strided_slice %61 {offsets = [0, 32], sizes = [2, 32], strides = [1, 1]} : vector<2x96xf32> to vector<2x32xf32>
    %72 = arith.addf %70, %71 : vector<2x32xf32>
    %73 = arith.negf %72 : vector<2x32xf32>
    %74 = math.exp %73 : vector<2x32xf32>
    %cst_42 = arith.constant 1.000000e+00 : f32
    %75 = vector.broadcast %cst_42 : f32 to vector<2x32xf32>
    %76 = arith.addf %75, %74 : vector<2x32xf32>
    %77 = arith.divf %75, %76 : vector<2x32xf32>
    %78 = vector.extract_strided_slice %56 {offsets = [0, 64], sizes = [2, 32], strides = [1, 1]} : vector<2x96xf32> to vector<2x32xf32>
    %79 = vector.extract_strided_slice %61 {offsets = [0, 64], sizes = [2, 32], strides = [1, 1]} : vector<2x96xf32> to vector<2x32xf32>
    %80 = arith.mulf %69, %79 : vector<2x32xf32>
    %81 = arith.addf %78, %80 : vector<2x32xf32>
    %82 = math.tanh %81 : vector<2x32xf32>
    %cst_43 = arith.constant 1.000000e+00 : f32
    %83 = vector.broadcast %cst_43 : f32 to vector<2x32xf32>
    %84 = arith.subf %83, %77 : vector<2x32xf32>
    %85 = arith.mulf %84, %82 : vector<2x32xf32>
    %86 = arith.mulf %77, %51 : vector<2x32xf32>
    %87 = arith.addf %85, %86 : vector<2x32xf32>
    %c0_44 = arith.constant 0 : index
    %c0_45 = arith.constant 0 : index
    %c0_46 = arith.constant 0 : index
    %88 = vector.load %arg20[%c0_44, %c0_45, %c0_46] : memref<2x2x32xf32, #tpu.memory_space<vmem>>, vector<1x2x32xf32>
    %89 = vector.shape_cast %88 : vector<1x2x32xf32> to vector<2x32xf32>
    %90 = vector.shape_cast %87 : vector<2x32xf32> to vector<1x2x32xf32>
    tpu.vector_store %arg20[%c0_44, %c0_45, %c0_46], %90 {strides = array<i32>} : memref<2x2x32xf32, #tpu.memory_space<vmem>>, vector<1x2x32xf32>,
    %c1_47 = arith.constant 1 : index
    %c0_48 = arith.constant 0 : index
    %c0_49 = arith.constant 0 : index
    %91 = vector.load %arg1[%c1_47, %c0_48, %c0_49] : memref<2x2x32xf32, #tpu.memory_space<vmem>>, vector<1x2x32xf32>
    %92 = vector.shape_cast %91 : vector<1x2x32xf32> to vector<2x32xf32>
    %c0_50 = arith.constant 0 : index
    %c0_51 = arith.constant 0 : index
    %93 = vector.load %arg13[%c0_50, %c0_51] : memref<32x96xf32, #tpu.memory_space<vmem>>, vector<32x96xf32>
    %cst_52 = arith.constant dense<0.000000e+00> : vector<2x96xf32>
    %94 = tpu.matmul %87, %93, %cst_52 {dimension_numbers = #tpu.dot_dimension_numbers<[1], [0], [0], [1], [0, 0, 1, 1], [], []>} : vector<2x32xf32>, vector<32x96xf32>, vector<2x96xf32> -> vector<2x96xf32>
    %c0_53 = arith.constant 0 : index
    %c0_54 = arith.constant 0 : index
    %95 = vector.load %arg15[%c0_53, %c0_54] : memref<1x96xf32, #tpu.memory_space<vmem>>, vector<1x96xf32>
    %96 = vector.broadcast %95 : vector<1x96xf32> to vector<2x96xf32>
    %97 = arith.addf %94, %96 : vector<2x96xf32>
    %c0_55 = arith.constant 0 : index
    %c0_56 = arith.constant 0 : index
    %98 = vector.load %arg14[%c0_55, %c0_56] : memref<32x96xf32, #tpu.memory_space<vmem>>, vector<32x96xf32>
    %cst_57 = arith.constant dense<0.000000e+00> : vector<2x96xf32>
    %99 = tpu.matmul %92, %98, %cst_57 {dimension_numbers = #tpu.dot_dimension_numbers<[1], [0], [0], [1], [0, 0, 1, 1], [], []>} : vector<2x32xf32>, vector<32x96xf32>, vector<2x96xf32> -> vector<2x96xf32>
    %c0_58 = arith.constant 0 : index
    %c0_59 = arith.constant 0 : index
    %100 = vector.load %arg16[%c0_58, %c0_59] : memref<1x96xf32, #tpu.memory_space<vmem>>, vector<1x96xf32>
    %101 = vector.broadcast %100 : vector<1x96xf32> to vector<2x96xf32>
    %102 = arith.addf %99, %101 : vector<2x96xf32>
    %103 = vector.extract_strided_slice %97 {offsets = [0, 0], sizes = [2, 32], strides = [1, 1]} : vector<2x96xf32> to vector<2x32xf32>
    %104 = vector.extract_strided_slice %102 {offsets = [0, 0], sizes = [2, 32], strides = [1, 1]} : vector<2x96xf32> to vector<2x32xf32>
    %105 = arith.addf %103, %104 : vector<2x32xf32>
    %106 = arith.negf %105 : vector<2x32xf32>
    %107 = math.exp %106 : vector<2x32xf32>
    %cst_60 = arith.constant 1.000000e+00 : f32
    %108 = vector.broadcast %cst_60 : f32 to vector<2x32xf32>
    %109 = arith.addf %108, %107 : vector<2x32xf32>
    %110 = arith.divf %108, %109 : vector<2x32xf32>
    %111 = vector.extract_strided_slice %97 {offsets = [0, 32], sizes = [2, 32], strides = [1, 1]} : vector<2x96xf32> to vector<2x32xf32>
    %112 = vector.extract_strided_slice %102 {offsets = [0, 32], sizes = [2, 32], strides = [1, 1]} : vector<2x96xf32> to vector<2x32xf32>
    %113 = arith.addf %111, %112 : vector<2x32xf32>
    %114 = arith.negf %113 : vector<2x32xf32>
    %115 = math.exp %114 : vector<2x32xf32>
    %cst_61 = arith.constant 1.000000e+00 : f32
    %116 = vector.broadcast %cst_61 : f32 to vector<2x32xf32>
    %117 = arith.addf %116, %115 : vector<2x32xf32>
    %118 = arith.divf %116, %117 : vector<2x32xf32>
    %119 = vector.extract_strided_slice %97 {offsets = [0, 64], sizes = [2, 32], strides = [1, 1]} : vector<2x96xf32> to vector<2x32xf32>
    %120 = vector.extract_strided_slice %102 {offsets = [0, 64], sizes = [2, 32], strides = [1, 1]} : vector<2x96xf32> to vector<2x32xf32>
    %121 = arith.mulf %110, %120 : vector<2x32xf32>
    %122 = arith.addf %119, %121 : vector<2x32xf32>
    %123 = math.tanh %122 : vector<2x32xf32>
    %cst_62 = arith.constant 1.000000e+00 : f32
    %124 = vector.broadcast %cst_62 : f32 to vector<2x32xf32>
    %125 = arith.subf %124, %118 : vector<2x32xf32>
    %126 = arith.mulf %125, %123 : vector<2x32xf32>
    %127 = arith.mulf %118, %92 : vector<2x32xf32>
    %128 = arith.addf %126, %127 : vector<2x32xf32>
    %c1_63 = arith.constant 1 : index
    %c0_64 = arith.constant 0 : index
    %c0_65 = arith.constant 0 : index
    %129 = vector.load %arg20[%c1_63, %c0_64, %c0_65] : memref<2x2x32xf32, #tpu.memory_space<vmem>>, vector<1x2x32xf32>
    %130 = vector.shape_cast %129 : vector<1x2x32xf32> to vector<2x32xf32>
    %131 = vector.shape_cast %128 : vector<2x32xf32> to vector<1x2x32xf32>
    tpu.vector_store %arg20[%c1_63, %c0_64, %c0_65], %131 {strides = array<i32>} : memref<2x2x32xf32, #tpu.memory_space<vmem>>, vector<1x2x32xf32>,
    %132 = tpu.concatenate %49, %128 in 1 : vector<2x64xf32>, vector<2x32xf32> -> vector<2x96xf32>
    %c0_66 = arith.constant 0 : index
    %c0_67 = arith.constant 0 : index
    %133 = vector.load %arg17[%c0_66, %c0_67] : memref<96x128xf32, #tpu.memory_space<vmem>>, vector<96x128xf32>
    %cst_68 = arith.constant dense<0.000000e+00> : vector<2x128xf32>
    %134 = tpu.matmul %132, %133, %cst_68 {dimension_numbers = #tpu.dot_dimension_numbers<[1], [0], [0], [1], [0, 0, 1, 1], [], []>} : vector<2x96xf32>, vector<96x128xf32>, vector<2x128xf32> -> vector<2x128xf32>
    %c0_69 = arith.constant 0 : index
    %c0_70 = arith.constant 0 : index
    %135 = vector.load %arg18[%c0_69, %c0_70] : memref<1x128xf32, #tpu.memory_space<vmem>>, vector<1x128xf32>
    %136 = vector.broadcast %135 : vector<1x128xf32> to vector<2x128xf32>
    %137 = arith.addf %134, %136 : vector<2x128xf32>
    %c0_71 = arith.constant 0 : index
    %c0_72 = arith.constant 0 : index
    %138 = vector.load %arg19[%c0_71, %c0_72] : memref<2x128xf32, #tpu.memory_space<vmem>>, vector<2x128xf32>
    tpu.vector_store %arg19[%c0_71, %c0_72], %137 {strides = array<i32>} : memref<2x128xf32, #tpu.memory_space<vmem>>, vector<2x128xf32>,
    return
  }
}

</mosaic_0001>

<llo_original>
// kernel: tpu_custom_call.1
$region0: #{tpu_custom_call.1}
  #allocation0 [shape = 'u32[]', space=smem, size = 0x4, offset = 0x4, fixed_abs, tag = 'smem constant byte address 0x4 - core index']
  #allocation1 [shape = 'u32[144,128]{1,0:T(1,128)}', space=vmem, size = 0x12000, scoped, tag = 'internal scratch']
  %s0 = inlined_call_operand.vmem [shape: s32[2], index: 0, kind: input, shape index: {}]
  %s1 = inlined_call_operand.vmem [shape: f32[2,2,32], index: 1, kind: input, shape index: {}]
  %s2 = inlined_call_operand.vmem [shape: f32[2,8,32], index: 2, kind: input, shape index: {}]
  %s3 = inlined_call_operand.vmem [shape: f32[2,8], index: 3, kind: input, shape index: {}]
  %s4 = inlined_call_operand.vmem [shape: f32[50,32], index: 4, kind: input, shape index: {}]
  %s5 = inlined_call_operand.hbm [shape: f32[32,32], index: 5, kind: input, shape index: {}]
  %s6 = inlined_call_operand.hbm [shape: f32[32,32], index: 6, kind: input, shape index: {}]
  %s7 = inlined_call_operand.hbm [shape: f32[1,32], index: 7, kind: input, shape index: {}]
  %s8 = inlined_call_operand.hbm [shape: f32[1,32], index: 8, kind: input, shape index: {}]
  %s9 = inlined_call_operand.hbm [shape: f32[64,96], index: 9, kind: input, shape index: {}]
  %s10 = inlined_call_operand.hbm [shape: f32[32,96], index: 10, kind: input, shape index: {}]
  %s11 = inlined_call_operand.hbm [shape: f32[1,96], index: 11, kind: input, shape index: {}]
  %s12 = inlined_call_operand.hbm [shape: f32[1,96], index: 12, kind: input, shape index: {}]
  %s13 = inlined_call_operand.hbm [shape: f32[32,96], index: 13, kind: input, shape index: {}]
  %s14 = inlined_call_operand.hbm [shape: f32[32,96], index: 14, kind: input, shape index: {}]
  %s15 = inlined_call_operand.hbm [shape: f32[1,96], index: 15, kind: input, shape index: {}]
  %s16 = inlined_call_operand.hbm [shape: f32[1,96], index: 16, kind: input, shape index: {}]
  %s17 = inlined_call_operand.vmem [shape: f32[96,128], index: 17, kind: input, shape index: {}]
  %s18 = inlined_call_operand.vmem [shape: f32[1,128], index: 18, kind: input, shape index: {}]
  %s19 = inlined_call_operand.hbm [shape: f32[2,128], index: 19, kind: output, shape index: {0}]
  %s20 = inlined_call_operand.hbm [shape: f32[2,2,32], index: 20, kind: output, shape index: {1}]
  %s21 = inlined_call_operand.hbm [shape: f32[2,8], index: 21, kind: output, shape index: {2}]
  %22 = xla_tuple %s19, %s20, %s21
  %s23 = sld [smem:[#allocation0]]
  $region154: #{tpu_custom_call.1} parent=0
    _
  %s25 = ssub.s32 1, %s23
  %s26 = scalar_select 0, %s25, %s23
  $region1: #{tpu_custom_call.1} parent=0
    #allocation2 [shape = 'u8[512]{0}', space=smem, size = 0x200, scoped, tag = 'input window, operand 0, single buffered']
    #allocation3 [shape = 's32[1]{0}', space=sflag, size = 0x4, scoped, tag = 'scoped memory for tpu_custom_call.1']
    #allocation4 [shape = 's32[1]{0}', space=sflag, size = 0x4, scoped, tag = 'scoped memory for tpu_custom_call.1']
    #allocation5 [shape = 's32[1]{0}', space=sflag, size = 0x4, scoped, tag = 'scoped memory for tpu_custom_call.1']
    #allocation6 [shape = 'u8[16384]{0}', space=vmem, size = 0x4000, scoped, tag = 'input window, operand 5, single buffered']
    #allocation7 [shape = 'u8[16384]{0}', space=vmem, size = 0x4000, scoped, tag = 'input window, operand 6, single buffered']
    #allocation8 [shape = 's32[1]{0}', space=sflag, size = 0x4, scoped, tag = 'scoped memory for tpu_custom_call.1']
    #allocation9 [shape = 'u8[512]{0}', space=vmem, size = 0x400, scoped, tag = 'input window, operand 7, single buffered']
    #allocation10 [shape = 'u8[512]{0}', space=vmem, size = 0x400, scoped, tag = 'input window, operand 8, single buffered']
    #allocation11 [shape = 's32[1]{0}', space=sflag, size = 0x4, scoped, tag = 'scoped memory for tpu_custom_call.1']
    #allocation12 [shape = 'u8[32768]{0}', space=vmem, size = 0x8000, scoped, tag = 'input window, operand 9, single buffered']
    #allocation13 [shape = 'u8[16384]{0}', space=vmem, size = 0x4000, scoped, tag = 'input window, operand 10, single buffered']
    #allocation14 [shape = 's32[1]{0}', space=sflag, size = 0x4, scoped, tag = 'scoped memory for tpu_custom_call.1']
    #allocation15 [shape = 'u8[512]{0}', space=vmem, size = 0x400, scoped, tag = 'input window, operand 11, single buffered']
    #allocation16 [shape = 'u8[512]{0}', space=vmem, size = 0x400, scoped, tag = 'input window, operand 12, single buffered']
    #allocation17 [shape = 's32[1]{0}', space=sflag, size = 0x4, scoped, tag = 'scoped memory for tpu_custom_call.1']
    #allocation18 [shape = 'u8[16384]{0}', space=vmem, size = 0x4000, scoped, tag = 'input window, operand 13, single buffered']
    #allocation19 [shape = 'u8[16384]{0}', space=vmem, size = 0x4000, scoped, tag = 'input window, operand 14, single buffered']
    #allocation20 [shape = 's32[1]{0}', space=sflag, size = 0x4, scoped, tag = 'scoped memory for tpu_custom_call.1']
    #allocation21 [shape = 'u8[512]{0}', space=vmem, size = 0x400, scoped, tag = 'input window, operand 15, single buffered']
    #allocation22 [shape = 'u8[512]{0}', space=vmem, size = 0x400, scoped, tag = 'input window, operand 16, single buffered']
    #allocation23 [shape = 's32[1]{0}', space=sflag, size = 0x4, scoped, tag = 'scoped memory for tpu_custom_call.1']
    #allocation24 [shape = 'u8[1024]{0}', space=vmem, size = 0x400, scoped, tag = 'output window, operand 0, single buffered']
    #allocation25 [shape = 'u8[2048]{0}', space=vmem, size = 0x800, scoped, tag = 'output window, operand 1, single buffered']
    #allocation26 [shape = 's32[1]{0}', space=sflag, size = 0x4, scoped, tag = 'scoped memory for tpu_custom_call.1']
    #allocation27 [shape = 'u8[1024]{0}', space=vmem, size = 0x400, scoped, tag = 'output window, operand 2, single buffered']
    %27 = vsyncpa [#allocation5], 0
    %28 = vsyncpa [#allocation3], 0
    %29 = vsyncpa [#allocation8], 0
    %30 = vsyncpa [#allocation11], 0
    %31 = vsyncpa [#allocation14], 0
    %32 = vsyncpa [#allocation17], 0
    %33 = vsyncpa [#allocation20], 0
    %34 = vsyncpa [#allocation23], 0
    %35 = vsyncpa [#allocation4], 0
    %36 = vsyncpa [#allocation26], 0
    // Predicated region
    $region2: #{tpu_custom_call.1} parent=1 // pred_check
      _
    $region3: #{tpu_custom_call.1} parent=1 // pred_check_branch
      %38 = sbr.rel (0) target = $region5
    $region4: #{tpu_custom_call.1} parent=1 // pred_region
      %s40 = ssub.s32 16, 16
      %41 = vsyncadd [#allocation5], %s40
      %s43 = sshll.u32 %s0, 4
      %s44 = int_to_ptr.vmem [resolvable:$true] %s43
      %46 = dma.vmem_to_smem %s44, 16, [#allocation2], [#allocation5]
    $region5: #{tpu_custom_call.1} parent=1 // pred_fallthru
      _
    // Predicated region
    $region6: #{tpu_custom_call.1} parent=1 // pred_check
      _
    $region7: #{tpu_custom_call.1} parent=1 // pred_check_branch
      %48 = sbr.rel (0) target = $region9
    $region8: #{tpu_custom_call.1} parent=1 // pred_region
      _
    $region9: #{tpu_custom_call.1} parent=1 // pred_fallthru
      _
    // Predicated region
    $region10: #{tpu_custom_call.1} parent=1 // pred_check
      _
    $region11: #{tpu_custom_call.1} parent=1 // pred_check_branch
      %50 = sbr.rel (0) target = $region13
    $region12: #{tpu_custom_call.1} parent=1 // pred_region
      _
    $region13: #{tpu_custom_call.1} parent=1 // pred_fallthru
      _
    // Predicated region
    $region14: #{tpu_custom_call.1} parent=1 // pred_check
      _
    $region15: #{tpu_custom_call.1} parent=1 // pred_check_branch
      %52 = sbr.rel (0) target = $region17
    $region16: #{tpu_custom_call.1} parent=1 // pred_region
      _
    $region17: #{tpu_custom_call.1} parent=1 // pred_fallthru
      _
    // Predicated region
    $region18: #{tpu_custom_call.1} parent=1 // pred_check
      _
    $region19: #{tpu_custom_call.1} parent=1 // pred_check_branch
      %54 = sbr.rel (0) target = $region21
    $region20: #{tpu_custom_call.1} parent=1 // pred_region
      _
    $region21: #{tpu_custom_call.1} parent=1 // pred_fallthru
      _
    // Predicated region
    $region22: #{tpu_custom_call.1} parent=1 // pred_check
      _
    $region23: #{tpu_custom_call.1} parent=1 // pred_check_branch
      %56 = sbr.rel (0) target = $region25
    $region24: #{tpu_custom_call.1} parent=1 // pred_region
      %s58 = ssub.s32 512, 512
      %59 = vsyncadd [#allocation3], %s58
      %s60 = sshll.u32 [#allocation6], 4
      %s61 = int_to_ptr.vmem [resolvable:$true] %s60
      %66 = dma.hbm_to_vmem [thread:$0]  %s5, 512, %s61, [#allocation3], 128, 128, 8
    $region25: #{tpu_custom_call.1} parent=1 // pred_fallthru
      _
    // Predicated region
    $region26: #{tpu_custom_call.1} parent=1 // pred_check
      _
    $region27: #{tpu_custom_call.1} parent=1 // pred_check_branch
      %68 = sbr.rel (0) target = $region29
    $region28: #{tpu_custom_call.1} parent=1 // pred_region
      %s70 = ssub.s32 512, 512
      %71 = vsyncadd [#allocation8], %s70
      %s72 = sshll.u32 [#allocation7], 4
      %s73 = int_to_ptr.vmem [resolvable:$true] %s72
      %78 = dma.hbm_to_vmem [thread:$0]  %s6, 512, %s73, [#allocation8], 128, 128, 8
    $region29: #{tpu_custom_call.1} parent=1 // pred_fallthru
      _
    // Predicated region
    $region30: #{tpu_custom_call.1} parent=1 // pred_check
      _
    $region31: #{tpu_custom_call.1} parent=1 // pred_check_branch
      %80 = sbr.rel (0) target = $region33
    $region32: #{tpu_custom_call.1} parent=1 // pred_region
      %s82 = ssub.s32 16, 16
      %83 = vsyncadd [#allocation8], %s82
      %s85 = sshll.u32 [#allocation9], 4
      %s86 = int_to_ptr.vmem [resolvable:$true] %s85
      %88 = dma.hbm_to_vmem [thread:$0]  %s7, 16, %s86, [#allocation8]
    $region33: #{tpu_custom_call.1} parent=1 // pred_fallthru
      _
    // Predicated region
    $region34: #{tpu_custom_call.1} parent=1 // pred_check
      _
    $region35: #{tpu_custom_call.1} parent=1 // pred_check_branch
      %90 = sbr.rel (0) target = $region37
    $region36: #{tpu_custom_call.1} parent=1 // pred_region
      %s92 = ssub.s32 16, 16
      %93 = vsyncadd [#allocation11], %s92
      %s95 = sshll.u32 [#allocation10], 4
      %s96 = int_to_ptr.vmem [resolvable:$true] %s95
      %98 = dma.hbm_to_vmem [thread:$0]  %s8, 16, %s96, [#allocation11]
    $region37: #{tpu_custom_call.1} parent=1 // pred_fallthru
      _
    // Predicated region
    $region38: #{tpu_custom_call.1} parent=1 // pred_check
      _
    $region39: #{tpu_custom_call.1} parent=1 // pred_check_branch
      %100 = sbr.rel (0) target = $region41
    $region40: #{tpu_custom_call.1} parent=1 // pred_region
      %s102 = ssub.s32 1024, 1024
      %103 = vsyncadd [#allocation11], %s102
      %s104 = sshll.u32 [#allocation12], 4
      %s105 = int_to_ptr.vmem [resolvable:$true] %s104
      %110 = dma.hbm_to_vmem [thread:$0]  %s9, 1024, %s105, [#allocation11], 128, 128, 8
    $region41: #{tpu_custom_call.1} parent=1 // pred_fallthru
      _
    // Predicated region
    $region42: #{tpu_custom_call.1} parent=1 // pred_check
      _
    $region43: #{tpu_custom_call.1} parent=1 // pred_check_branch
      %112 = sbr.rel (0) target = $region45
    $region44: #{tpu_custom_call.1} parent=1 // pred_region
      %s114 = ssub.s32 512, 512
      %115 = vsyncadd [#allocation14], %s114
      %s116 = sshll.u32 [#allocation13], 4
      %s117 = int_to_ptr.vmem [resolvable:$true] %s116
      %122 = dma.hbm_to_vmem [thread:$0]  %s10, 512, %s117, [#allocation14], 128, 128, 8
    $region45: #{tpu_custom_call.1} parent=1 // pred_fallthru
      _
    // Predicated region
    $region46: #{tpu_custom_call.1} parent=1 // pred_check
      _
    $region47: #{tpu_custom_call.1} parent=1 // pred_check_branch
      %124 = sbr.rel (0) target = $region49
    $region48: #{tpu_custom_call.1} parent=1 // pred_region
      %s126 = ssub.s32 16, 16
      %127 = vsyncadd [#allocation14], %s126
      %s129 = sshll.u32 [#allocation15], 4
      %s130 = int_to_ptr.vmem [resolvable:$true] %s129
      %132 = dma.hbm_to_vmem [thread:$0]  %s11, 16, %s130, [#allocation14]
    $region49: #{tpu_custom_call.1} parent=1 // pred_fallthru
      _
    // Predicated region
    $region50: #{tpu_custom_call.1} parent=1 // pred_check
      _
    $region51: #{tpu_custom_call.1} parent=1 // pred_check_branch
      %134 = sbr.rel (0) target = $region53
    $region52: #{tpu_custom_call.1} parent=1 // pred_region
      %s136 = ssub.s32 16, 16
      %137 = vsyncadd [#allocation17], %s136
      %s139 = sshll.u32 [#allocation16], 4
      %s140 = int_to_ptr.vmem [resolvable:$true] %s139
      %142 = dma.hbm_to_vmem [thread:$0]  %s12, 16, %s140, [#allocation17]
    $region53: #{tpu_custom_call.1} parent=1 // pred_fallthru
      _
    // Predicated region
    $region54: #{tpu_custom_call.1} parent=1 // pred_check
      _
    $region55: #{tpu_custom_call.1} parent=1 // pred_check_branch
      %144 = sbr.rel (0) target = $region57
    $region56: #{tpu_custom_call.1} parent=1 // pred_region
      %s146 = ssub.s32 512, 512
      %147 = vsyncadd [#allocation17], %s146
      %s148 = sshll.u32 [#allocation18], 4
      %s149 = int_to_ptr.vmem [resolvable:$true] %s148
      %154 = dma.hbm_to_vmem [thread:$0]  %s13, 512, %s149, [#allocation17], 128, 128, 8
    $region57: #{tpu_custom_call.1} parent=1 // pred_fallthru
      _
    // Predicated region
    $region58: #{tpu_custom_call.1} parent=1 // pred_check
      _
    $region59: #{tpu_custom_call.1} parent=1 // pred_check_branch
      %156 = sbr.rel (0) target = $region61
    $region60: #{tpu_custom_call.1} parent=1 // pred_region
      %s158 = ssub.s32 512, 512
      %159 = vsyncadd [#allocation20], %s158
      %s160 = sshll.u32 [#allocation19], 4
      %s161 = int_to_ptr.vmem [resolvable:$true] %s160
      %166 = dma.hbm_to_vmem [thread:$0]  %s14, 512, %s161, [#allocation20], 128, 128, 8
    $region61: #{tpu_custom_call.1} parent=1 // pred_fallthru
      _
    // Predicated region
    $region62: #{tpu_custom_call.1} parent=1 // pred_check
      _
    $region63: #{tpu_custom_call.1} parent=1 // pred_check_branch
      %168 = sbr.rel (0) target = $region65
    $region64: #{tpu_custom_call.1} parent=1 // pred_region
      %s170 = ssub.s32 16, 16
      %171 = vsyncadd [#allocation20], %s170
      %s173 = sshll.u32 [#allocation21], 4
      %s174 = int_to_ptr.vmem [resolvable:$true] %s173
      %176 = dma.hbm_to_vmem [thread:$0]  %s15, 16, %s174, [#allocation20]
    $region65: #{tpu_custom_call.1} parent=1 // pred_fallthru
      _
    // Predicated region
    $region66: #{tpu_custom_call.1} parent=1 // pred_check
      _
    $region67: #{tpu_custom_call.1} parent=1 // pred_check_branch
      %178 = sbr.rel (0) target = $region69
    $region68: #{tpu_custom_call.1} parent=1 // pred_region
      %s180 = ssub.s32 16, 16
      %181 = vsyncadd [#allocation23], %s180
      %s183 = sshll.u32 [#allocation22], 4
      %s184 = int_to_ptr.vmem [resolvable:$true] %s183
      %186 = dma.hbm_to_vmem [thread:$0]  %s16, 16, %s184, [#allocation23]
    $region69: #{tpu_custom_call.1} parent=1 // pred_fallthru
      _
    // Predicated region
    $region70: #{tpu_custom_call.1} parent=1 // pred_check
      _
    $region71: #{tpu_custom_call.1} parent=1 // pred_check_branch
      %188 = sbr.rel (0) target = $region73
    $region72: #{tpu_custom_call.1} parent=1 // pred_region
      _
    $region73: #{tpu_custom_call.1} parent=1 // pred_fallthru
      _
    // Predicated region
    $region74: #{tpu_custom_call.1} parent=1 // pred_check
      _
    $region75: #{tpu_custom_call.1} parent=1 // pred_check_branch
      %190 = sbr.rel (0) target = $region77
    $region76: #{tpu_custom_call.1} parent=1 // pred_region
      _
    $region77: #{tpu_custom_call.1} parent=1 // pred_fallthru
      _
    // Predicated region
    $region78: #{tpu_custom_call.1} parent=1 // pred_check
      _
    $region79: #{tpu_custom_call.1} parent=1 // pred_check_branch
      %192 = sbr.rel (0) target = $region81
    $region80: #{tpu_custom_call.1} parent=1 // pred_region
      %193 = dma.done [#allocation5], 16
    $region81: #{tpu_custom_call.1} parent=1 // pred_fallthru
      _
    // Predicated region
    $region82: #{tpu_custom_call.1} parent=1 // pred_check
      _
    $region83: #{tpu_custom_call.1} parent=1 // pred_check_branch
      %195 = sbr.rel (0) target = $region85
    $region84: #{tpu_custom_call.1} parent=1 // pred_region
      %196 = dma.done [#allocation3], 512
    $region85: #{tpu_custom_call.1} parent=1 // pred_fallthru
      _
    // Predicated region
    $region86: #{tpu_custom_call.1} parent=1 // pred_check
      _
    $region87: #{tpu_custom_call.1} parent=1 // pred_check_branch
      %198 = sbr.rel (0) target = $region89
    $region88: #{tpu_custom_call.1} parent=1 // pred_region
      %199 = dma.done [#allocation8], 512
    $region89: #{tpu_custom_call.1} parent=1 // pred_fallthru
      _
    // Predicated region
    $region90: #{tpu_custom_call.1} parent=1 // pred_check
      _
    $region91: #{tpu_custom_call.1} parent=1 // pred_check_branch
      %201 = sbr.rel (0) target = $region93
    $region92: #{tpu_custom_call.1} parent=1 // pred_region
      %202 = dma.done [#allocation8], 16
    $region93: #{tpu_custom_call.1} parent=1 // pred_fallthru
      _
    // Predicated region
    $region94: #{tpu_custom_call.1} parent=1 // pred_check
      _
    $region95: #{tpu_custom_call.1} parent=1 // pred_check_branch
      %204 = sbr.rel (0) target = $region97
    $region96: #{tpu_custom_call.1} parent=1 // pred_region
      %205 = dma.done [#allocation11], 16
    $region97: #{tpu_custom_call.1} parent=1 // pred_fallthru
      _
    // Predicated region
    $region98: #{tpu_custom_call.1} parent=1 // pred_check
      _
    $region99: #{tpu_custom_call.1} parent=1 // pred_check_branch
      %207 = sbr.rel (0) target = $region101
    $region100: #{tpu_custom_call.1} parent=1 // pred_region
      %208 = dma.done [#allocation11], 1024
    $region101: #{tpu_custom_call.1} parent=1 // pred_fallthru
      _
    // Predicated region
    $region102: #{tpu_custom_call.1} parent=1 // pred_check
      _
    $region103: #{tpu_custom_call.1} parent=1 // pred_check_branch
      %210 = sbr.rel (0) target = $region105
    $region104: #{tpu_custom_call.1} parent=1 // pred_region
      %211 = dma.done [#allocation14], 512
    $region105: #{tpu_custom_call.1} parent=1 // pred_fallthru
      _
    // Predicated region
    $region106: #{tpu_custom_call.1} parent=1 // pred_check
      _
    $region107: #{tpu_custom_call.1} parent=1 // pred_check_branch
      %213 = sbr.rel (0) target = $region109
    $region108: #{tpu_custom_call.1} parent=1 // pred_region
      %214 = dma.done [#allocation14], 16
    $region109: #{tpu_custom_call.1} parent=1 // pred_fallthru
      _
    // Predicated region
    $region110: #{tpu_custom_call.1} parent=1 // pred_check
      _
    $region111: #{tpu_custom_call.1} parent=1 // pred_check_branch
      %216 = sbr.rel (0) target = $region113
    $region112: #{tpu_custom_call.1} parent=1 // pred_region
      %217 = dma.done [#allocation17], 16
    $region113: #{tpu_custom_call.1} parent=1 // pred_fallthru
      _
    // Predicated region
    $region114: #{tpu_custom_call.1} parent=1 // pred_check
      _
    $region115: #{tpu_custom_call.1} parent=1 // pred_check_branch
      %219 = sbr.rel (0) target = $region117
    $region116: #{tpu_custom_call.1} parent=1 // pred_region
      %220 = dma.done [#allocation17], 512
    $region117: #{tpu_custom_call.1} parent=1 // pred_fallthru
      _
    // Predicated region
    $region118: #{tpu_custom_call.1} parent=1 // pred_check
      _
    $region119: #{tpu_custom_call.1} parent=1 // pred_check_branch
      %222 = sbr.rel (0) target = $region121
    $region120: #{tpu_custom_call.1} parent=1 // pred_region
      %223 = dma.done [#allocation20], 512
    $region121: #{tpu_custom_call.1} parent=1 // pred_fallthru
      _
    // Predicated region
    $region122: #{tpu_custom_call.1} parent=1 // pred_check
      _
    $region123: #{tpu_custom_call.1} parent=1 // pred_check_branch
      %225 = sbr.rel (0) target = $region125
    $region124: #{tpu_custom_call.1} parent=1 // pred_region
      %226 = dma.done [#allocation20], 16
    $region125: #{tpu_custom_call.1} parent=1 // pred_fallthru
      _
    // Predicated region
    $region126: #{tpu_custom_call.1} parent=1 // pred_check
      _
    $region127: #{tpu_custom_call.1} parent=1 // pred_check_branch
      %228 = sbr.rel (0) target = $region129
    $region128: #{tpu_custom_call.1} parent=1 // pred_region
      %229 = dma.done [#allocation23], 16
    $region129: #{tpu_custom_call.1} parent=1 // pred_fallthru
      _
    %230 = sfence
    %s231 = sld [smem:[#allocation2]]
    %s232 = scalar_lea.vmem %s4, %s231
    %v233 = vld [vmem:[%s232] sm:$0x1]
    %s234 = sld [smem:[#allocation2 + $0x1]]
    %s235 = scalar_lea.vmem %s4, %s234
    %v236 = vld [vmem:[%s235] sm:$0x1]
    %v238 = vrot.slane %v236, 7
    %vm240 = vcmask 1040384
    %v241 = vsel %vm240, %v233, %v238
    %s242 = scalar_lea.vmem %s1, 2
    %v243 = vld [vmem:[%s242] sm:$0x3]
    %v244 = vld [vmem:[%s2] sm:$0xff]
    %v245 = vld [vmem:[%s2 + $0x8] sm:$0xff]
    %v246 = vld [vmem:[#allocation6] sm:$0xff]
    %v247 = vld [vmem:[#allocation6 + $0x8] sm:$0xff]
    %v248 = vld [vmem:[#allocation6 + $0x10] sm:$0xff]
    %v249 = vld [vmem:[#allocation6 + $0x18] sm:$0xff]
    %v250 = vld [vmem:[#allocation9] sm:$0x1]
    %v252 = vlaneseq
    %v253 = vshrl.u32 %v252, 7
    %v254 = vsub.s32 0, %v253
    %v255 = vrot.slane %v250, %v254
    %vm257 = vcmask 261120
    %v259 = vsel %vm257, %v243, 0
    %261 = vmatprep.subr.mxu0 0.0
    %262 = vmatpush1.msra.mxu0 0.0
    %263 = vmatprep.subr.mxu0 0.0
    %264 = vmatpush1.msra.mxu0 0.0
    %265 = vmatprep.subr.mxu0 0.0
    %266 = vmatpush1.msra.mxu0 0.0
    %267 = vmatprep.subr.mxu0 0.0
    %268 = vmatpush1.msra.mxu0 0.0
    %269 = vmatprep.subr.mxu0 0.0
    %270 = vmatpush1.msra.mxu0 0.0
    %271 = vmatprep.subr.mxu0 0.0
    %272 = vmatpush1.msra.mxu0 0.0
    %273 = vmatprep.subr.mxu0 0.0
    %274 = vmatpush1.msra.mxu0 0.0
    %275 = vmatprep.subr.mxu0 0.0
    %276 = vmatpush1.msra.mxu0 0.0
    %277 = vmatprep.subr.mxu0 0.0
    %278 = vmatpush1.msra.mxu0 0.0
    %279 = vmatprep.subr.mxu0 0.0
    %280 = vmatpush1.msra.mxu0 0.0
    %281 = vmatprep.subr.mxu0 0.0
    %282 = vmatpush1.msra.mxu0 0.0
    %283 = vmatprep.subr.mxu0 0.0
    %284 = vmatpush1.msra.mxu0 0.0
    %285 = vmatprep.subr.mxu0 0.0
    %286 = vmatpush1.msra.mxu0 %v249
    %287 = vmatprep.subr.mxu0 0.0
    %288 = vmatpush1.msra.mxu0 %v248
    %289 = vmatprep.subr.mxu0 0.0
    %290 = vmatpush1.msra.mxu0 %v247
    %291 = vmatprep.subr.mxu0 0.0
    %292 = vmatpush1.msra.mxu0 %v246
    %293 = vmatprep.subr.mxu0 0.0
    %294 = vmatpush2.msra.mxu0 0.0
    %295 = vmatprep.subr.mxu0 0.0
    %296 = vmatpush2.msra.mxu0 0.0
    %297 = vmatprep.subr.mxu0 0.0
    %298 = vmatpush2.msra.mxu0 0.0
    %299 = vmatprep.subr.mxu0 0.0
    %300 = vmatpush2.msra.mxu0 0.0
    %301 = vmatprep.subr.mxu0 0.0
    %302 = vmatpush2.msra.mxu0 0.0
    %303 = vmatprep.subr.mxu0 0.0
    %304 = vmatpush2.msra.mxu0 0.0
    %305 = vmatprep.subr.mxu0 0.0
    %306 = vmatpush2.msra.mxu0 0.0
    %307 = vmatprep.subr.mxu0 0.0
    %308 = vmatpush2.msra.mxu0 0.0
    %309 = vmatprep.subr.mxu0 0.0
    %310 = vmatpush2.msra.mxu0 0.0
    %311 = vmatprep.subr.mxu0 0.0
    %312 = vmatpush2.msra.mxu0 0.0
    %313 = vmatprep.subr.mxu0 0.0
    %314 = vmatpush2.msra.mxu0 0.0
    %315 = vmatprep.subr.mxu0 0.0
    %316 = vmatpush2.msra.mxu0 0.0
    %317 = vmatprep.subr.mxu0 0.0
    %318 = vmatpush2.msra.mxu0 0.0
    %319 = vmatprep.subr.mxu0 0.0
    %320 = vmatpush2.msra.mxu0 0.0
    %321 = vmatprep.subr.mxu0 0.0
    %322 = vmatpush2.msra.mxu0 0.0
    %323 = vmatprep.subr.mxu0 0.0
    %324 = vmatpush2.msra.mxu0 0.0
    %325 = vmatprep.mubr.f32.mxu0 0.0
    %326 = vmatmul.mubr.f32.gmra.mxu0 %v259
    %v327 = vpop.f32.mrf.mxu0
    %v328 = vadd.f32 %v255, %v327
    %v329 = vpop.f32.mrf.mxu0
    %330 = vdwg.mxu0
    %v331 = vld [vmem:[#allocation7] sm:$0xff]
    %v332 = vld [vmem:[#allocation7 + $0x8] sm:$0xff]
    %v333 = vld [vmem:[#allocation7 + $0x10] sm:$0xff]
    %v334 = vld [vmem:[#allocation7 + $0x18] sm:$0xff]
    %v336 = vsel %vm257, %v244, 0
    %v339 = vsel %vm257, %v245, 0
    %341 = vmatprep.subr.mxu0 0.0
    %342 = vmatpush1.msra.mxu0 0.0
    %343 = vmatprep.subr.mxu0 0.0
    %344 = vmatpush1.msra.mxu0 0.0
    %345 = vmatprep.subr.mxu0 0.0
    %346 = vmatpush1.msra.mxu0 0.0
    %347 = vmatprep.subr.mxu0 0.0
    %348 = vmatpush1.msra.mxu0 0.0
    %349 = vmatprep.subr.mxu0 0.0
    %350 = vmatpush1.msra.mxu0 0.0
    %351 = vmatprep.subr.mxu0 0.0
    %352 = vmatpush1.msra.mxu0 0.0
    %353 = vmatprep.subr.mxu0 0.0
    %354 = vmatpush1.msra.mxu0 0.0
    %355 = vmatprep.subr.mxu0 0.0
    %356 = vmatpush1.msra.mxu0 0.0
    %357 = vmatprep.subr.mxu0 0.0
    %358 = vmatpush1.msra.mxu0 0.0
    %359 = vmatprep.subr.mxu0 0.0
    %360 = vmatpush1.msra.mxu0 0.0
    %361 = vmatprep.subr.mxu0 0.0
    %362 = vmatpush1.msra.mxu0 0.0
    %363 = vmatprep.subr.mxu0 0.0
    %364 = vmatpush1.msra.mxu0 0.0
    %365 = vmatprep.subr.mxu0 0.0
    %366 = vmatpush1.msra.mxu0 %v334
    %367 = vmatprep.subr.mxu0 0.0
    %368 = vmatpush1.msra.mxu0 %v333
    %369 = vmatprep.subr.mxu0 0.0
    %370 = vmatpush1.msra.mxu0 %v332
    %371 = vmatprep.subr.mxu0 0.0
    %372 = vmatpush1.msra.mxu0 %v331
    %373 = vmatprep.subr.mxu0 0.0
    %374 = vmatpush2.msra.mxu0 0.0
    %375 = vmatprep.subr.mxu0 0.0
    %376 = vmatpush2.msra.mxu0 0.0
    %377 = vmatprep.subr.mxu0 0.0
    %378 = vmatpush2.msra.mxu0 0.0
    %379 = vmatprep.subr.mxu0 0.0
    %380 = vmatpush2.msra.mxu0 0.0
    %381 = vmatprep.subr.mxu0 0.0
    %382 = vmatpush2.msra.mxu0 0.0
    %383 = vmatprep.subr.mxu0 0.0
    %384 = vmatpush2.msra.mxu0 0.0
    %385 = vmatprep.subr.mxu0 0.0
    %386 = vmatpush2.msra.mxu0 0.0
    %387 = vmatprep.subr.mxu0 0.0
    %388 = vmatpush2.msra.mxu0 0.0
    %389 = vmatprep.subr.mxu0 0.0
    %390 = vmatpush2.msra.mxu0 0.0
    %391 = vmatprep.subr.mxu0 0.0
    %392 = vmatpush2.msra.mxu0 0.0
    %393 = vmatprep.subr.mxu0 0.0
    %394 = vmatpush2.msra.mxu0 0.0
    %395 = vmatprep.subr.mxu0 0.0
    %396 = vmatpush2.msra.mxu0 0.0
    %397 = vmatprep.subr.mxu0 0.0
    %398 = vmatpush2.msra.mxu0 0.0
    %399 = vmatprep.subr.mxu0 0.0
    %400 = vmatpush2.msra.mxu0 0.0
    %401 = vmatprep.subr.mxu0 0.0
    %402 = vmatpush2.msra.mxu0 0.0
    %403 = vmatprep.subr.mxu0 0.0
    %404 = vmatpush2.msra.mxu0 0.0
    %405 = vmatprep.mubr.f32.mxu0 0.0
    %406 = vmatmul.mubr.f32.gmra.mxu0 %v336
    %v407 = vpop.f32.mrf.mxu0
    %v408 = vadd.f32 0.0, %v407
    %v409 = vpop.f32.mrf.mxu0
    %410 = vmatprep.mubr.f32.mxu0 0.0
    %411 = vmatmul.mubr.f32.gmra.mxu0 %v339
    %v412 = vpop.f32.mrf.mxu0
    %v413 = vadd.f32 0.0, %v412
    %v414 = vpop.f32.mrf.mxu0
    %415 = vdwg.mxu0
    %v418 = vunpack.c.l.s4 1966171168
    %v419 = vunpack.c.0.s8 %v418
    %v420 = vlaneseq
    %v421 = vshrl.u32 %v420, 7
    %v422 = vsub.s32 %v419, %v421
    %v423 = vrot.slane %v328, %v422
    %v424 = vcombine.high %v423, %v423
    %v426 = vunpack.c.l.s4 1966171168
    %v427 = vunpack.c.0.s8 %v426
    %v428 = vlaneseq
    %v429 = vshrl.u32 %v428, 7
    %v430 = vsub.s32 %v427, %v429
    %v431 = vrot.slane %v423, %v430
    %v433 = vunpack.c.l.s4 1966171168
    %v434 = vunpack.c.0.s8 %v433
    %v435 = vlaneseq
    %v436 = vshrl.u32 %v435, 7
    %v437 = vsub.s32 %v434, %v436
    %v438 = vrot.slane %v424, %v437
    %v439 = vlaneseq
    %v440 = vshrl.u32 %v439, 7
    %v441 = vsub.s32 0, %v440
    %v442 = vrot.slane %v431, %v441
    %v443 = vlaneseq
    %v444 = vshrl.u32 %v443, 7
    %v445 = vsub.s32 0, %v444
    %v446 = vrot.slane %v438, %v445
    %v449 = vadd.f32 %v408, %v442
    %v450 = vadd.f32 %v413, %v446
    %v451 = vmax.f32 %v449, 0.0
    %v452 = vmax.f32 %v450, 0.0
    %v453 = vld [vmem:[#allocation10] sm:$0x1]
    %v455 = vlaneseq
    %v456 = vshrl.u32 %v455, 7
    %v457 = vsub.s32 0, %v456
    %v458 = vrot.slane %v453, %v457
    %v460 = vmul.f32 %v451, %v458
    %v461 = vmul.f32 %v452, %v458
    %v462 = vsel %vm257, %v460, 0.0
    %463 = vadd.xlane.f32.xlu0 %v462
    %v464 = vpop.xlane.xlu0 %463
    %v465 = vsel %vm257, %v461, 0.0
    %466 = vadd.xlane.f32.xlu0 %v465
    %v467 = vpop.xlane.xlu0 %466
    %v468 = vld [vmem:[%s3] sm:$0x3]
    %vm469 = vcmp.gt.f32.partialorder %v468, 0.0
    %v472 = vlaneseq
    %v473 = vand.u32 %v472, 127
    %v474 = vlaneseq
    %v475 = vshrl.u32 %v474, 7
    %v476 = vsub.s32 %v473, %v475
    %v477 = vrot.slane %v464, %v476
    %v478 = vlaneseq
    %v479 = vshrl.u32 %v478, 7
    %v480 = vsub.s32 %v473, %v479
    %v481 = vrot.slane %v467, %v480
    %vm482 = vcmask 1041409
    %v483 = vsel %vm482, %v481, %v477
    %v485 = vsel %vm469, %v483, -1e+30
    %vm486 = vcmask 58368
    %v487 = vsel %vm486, %v485, -inf
    %488 = vmax.xlane.f32.xlu0 %v487
    %v489 = vpop.xlane.xlu0 %488
    %v490 = vsub.f32 %v485, %v489
    %v491 = vmul.f32 %v490, 1.442695
    %v492 = vpow.pop %v491
    %v493 = vsel %vm486, %v492, 0.0
    %494 = vadd.xlane.f32.xlu0 %v493
    %v495 = vpop.xlane.xlu0 %494
    %v496 = vrcp.pop %v495
    %v497 = vmul.f32 %v492, %v496
    %498 = vst.msk [vmem:[#allocation27] sm:$0x3] %vm486, %v497
    %v499 = vlaneseq
    %v500 = vshrl.u32 %v499, 7
    %v501 = vsub.s32 0, %v500
    %v502 = vrot.slane %v497, %v501
    %504 = vbcast.lane.b32.xlu0 %v502, 256
    %v505 = vpop.permute.xlu0 %504
    %v506 = vlaneseq
    %v507 = vshrl.u32 %v506, 7
    %v508 = vsub.s32 1, %v507
    %v509 = vrot.slane %v497, %v508
    %511 = vbcast.lane.b32.xlu0 %v509, 256
    %v512 = vpop.permute.xlu0 %511
    %v513 = vmul.f32 %v505, %v244
    %v514 = vmul.f32 %v512, %v245
    %v515 = vsel %vm257, %v513, 0.0
    %v516 = vrot.slane %v515, 4
    %v517 = vadd.f32 %v515, %v516
    %v518 = vrot.slane %v517, 2
    %v519 = vadd.f32 %v517, %v518
    %v520 = vrot.slane %v519, 1
    %v521 = vadd.f32 %v519, %v520
    %v522 = vsel %vm257, %v514, 0.0
    %v523 = vrot.slane %v522, 4
    %v524 = vadd.f32 %v522, %v523
    %v525 = vrot.slane %v524, 2
    %v526 = vadd.f32 %v524, %v525
    %v527 = vrot.slane %v526, 1
    %v528 = vadd.f32 %v526, %v527
    %v531 = vsel %vm482, %v528, %v521
    %532 = vrot.lane.b32.xlu0 %v531, 32
    %v533 = vpop.permute.xlu0 %532
    %v535 = vsel %vm257, %v241, %v533
    %v536 = vld [vmem:[%s1] sm:$0x3]
    %v537 = vld [vmem:[#allocation12] sm:$0xff]
    %v538 = vld [vmem:[#allocation12 + $0x8] sm:$0xff]
    %v539 = vld [vmem:[#allocation12 + $0x10] sm:$0xff]
    %v540 = vld [vmem:[#allocation12 + $0x18] sm:$0xff]
    %v541 = vld [vmem:[#allocation12 + $0x20] sm:$0xff]
    %v542 = vld [vmem:[#allocation12 + $0x28] sm:$0xff]
    %v543 = vld [vmem:[#allocation12 + $0x30] sm:$0xff]
    %v544 = vld [vmem:[#allocation12 + $0x38] sm:$0xff]
    %v545 = vld [vmem:[#allocation15] sm:$0x1]
    %v547 = vlaneseq
    %v548 = vshrl.u32 %v547, 7
    %v549 = vsub.s32 0, %v548
    %v550 = vrot.slane %v545, %v549
    %vm552 = vcmask 523264
    %v554 = vsel %vm552, %v535, 0
    %556 = vmatprep.subr.mxu0 0.0
    %557 = vmatpush1.msra.mxu0 0.0
    %558 = vmatprep.subr.mxu0 0.0
    %559 = vmatpush1.msra.mxu0 0.0
    %560 = vmatprep.subr.mxu0 0.0
    %561 = vmatpush1.msra.mxu0 0.0
    %562 = vmatprep.subr.mxu0 0.0
    %563 = vmatpush1.msra.mxu0 0.0
    %564 = vmatprep.subr.mxu0 0.0
    %565 = vmatpush1.msra.mxu0 0.0
    %566 = vmatprep.subr.mxu0 0.0
    %567 = vmatpush1.msra.mxu0 0.0
    %568 = vmatprep.subr.mxu0 0.0
    %569 = vmatpush1.msra.mxu0 0.0
    %570 = vmatprep.subr.mxu0 0.0
    %571 = vmatpush1.msra.mxu0 0.0
    %572 = vmatprep.subr.mxu0 0.0
    %573 = vmatpush1.msra.mxu0 %v544
    %574 = vmatprep.subr.mxu0 0.0
    %575 = vmatpush1.msra.mxu0 %v543
    %576 = vmatprep.subr.mxu0 0.0
    %577 = vmatpush1.msra.mxu0 %v542
    %578 = vmatprep.subr.mxu0 0.0
    %579 = vmatpush1.msra.mxu0 %v541
    %580 = vmatprep.subr.mxu0 0.0
    %581 = vmatpush1.msra.mxu0 %v540
    %582 = vmatprep.subr.mxu0 0.0
    %583 = vmatpush1.msra.mxu0 %v539
    %584 = vmatprep.subr.mxu0 0.0
    %585 = vmatpush1.msra.mxu0 %v538
    %586 = vmatprep.subr.mxu0 0.0
    %587 = vmatpush1.msra.mxu0 %v537
    %588 = vmatprep.subr.mxu0 0.0
    %589 = vmatpush2.msra.mxu0 0.0
    %590 = vmatprep.subr.mxu0 0.0
    %591 = vmatpush2.msra.mxu0 0.0
    %592 = vmatprep.subr.mxu0 0.0
    %593 = vmatpush2.msra.mxu0 0.0
    %594 = vmatprep.subr.mxu0 0.0
    %595 = vmatpush2.msra.mxu0 0.0
    %596 = vmatprep.subr.mxu0 0.0
    %597 = vmatpush2.msra.mxu0 0.0
    %598 = vmatprep.subr.mxu0 0.0
    %599 = vmatpush2.msra.mxu0 0.0
    %600 = vmatprep.subr.mxu0 0.0
    %601 = vmatpush2.msra.mxu0 0.0
    %602 = vmatprep.subr.mxu0 0.0
    %603 = vmatpush2.msra.mxu0 0.0
    %604 = vmatprep.subr.mxu0 0.0
    %605 = vmatpush2.msra.mxu0 0.0
    %606 = vmatprep.subr.mxu0 0.0
    %607 = vmatpush2.msra.mxu0 0.0
    %608 = vmatprep.subr.mxu0 0.0
    %609 = vmatpush2.msra.mxu0 0.0
    %610 = vmatprep.subr.mxu0 0.0
    %611 = vmatpush2.msra.mxu0 0.0
    %612 = vmatprep.subr.mxu0 0.0
    %613 = vmatpush2.msra.mxu0 0.0
    %614 = vmatprep.subr.mxu0 0.0
    %615 = vmatpush2.msra.mxu0 0.0
    %616 = vmatprep.subr.mxu0 0.0
    %617 = vmatpush2.msra.mxu0 0.0
    %618 = vmatprep.subr.mxu0 0.0
    %619 = vmatpush2.msra.mxu0 0.0
    %620 = vmatprep.mubr.f32.mxu0 0.0
    %621 = vmatmul.mubr.f32.gmra.mxu0 %v554
    %v622 = vpop.f32.mrf.mxu0
    %v623 = vadd.f32 %v550, %v622
    %v624 = vpop.f32.mrf.mxu0
    %625 = vdwg.mxu0
    %v626 = vld [vmem:[#allocation13] sm:$0xff]
    %v627 = vld [vmem:[#allocation13 + $0x8] sm:$0xff]
    %v628 = vld [vmem:[#allocation13 + $0x10] sm:$0xff]
    %v629 = vld [vmem:[#allocation13 + $0x18] sm:$0xff]
    %v630 = vld [vmem:[#allocation16] sm:$0x1]
    %v632 = vlaneseq
    %v633 = vshrl.u32 %v632, 7
    %v634 = vsub.s32 0, %v633
    %v635 = vrot.slane %v630, %v634
    %v638 = vsel %vm257, %v536, 0
    %640 = vmatprep.subr.mxu0 0.0
    %641 = vmatpush1.msra.mxu0 0.0
    %642 = vmatprep.subr.mxu0 0.0
    %643 = vmatpush1.msra.mxu0 0.0
    %644 = vmatprep.subr.mxu0 0.0
    %645 = vmatpush1.msra.mxu0 0.0
    %646 = vmatprep.subr.mxu0 0.0
    %647 = vmatpush1.msra.mxu0 0.0
    %648 = vmatprep.subr.mxu0 0.0
    %649 = vmatpush1.msra.mxu0 0.0
    %650 = vmatprep.subr.mxu0 0.0
    %651 = vmatpush1.msra.mxu0 0.0
    %652 = vmatprep.subr.mxu0 0.0
    %653 = vmatpush1.msra.mxu0 0.0
    %654 = vmatprep.subr.mxu0 0.0
    %655 = vmatpush1.msra.mxu0 0.0
    %656 = vmatprep.subr.mxu0 0.0
    %657 = vmatpush1.msra.mxu0 0.0
    %658 = vmatprep.subr.mxu0 0.0
    %659 = vmatpush1.msra.mxu0 0.0
    %660 = vmatprep.subr.mxu0 0.0
    %661 = vmatpush1.msra.mxu0 0.0
    %662 = vmatprep.subr.mxu0 0.0
    %663 = vmatpush1.msra.mxu0 0.0
    %664 = vmatprep.subr.mxu0 0.0
    %665 = vmatpush1.msra.mxu0 %v629
    %666 = vmatprep.subr.mxu0 0.0
    %667 = vmatpush1.msra.mxu0 %v628
    %668 = vmatprep.subr.mxu0 0.0
    %669 = vmatpush1.msra.mxu0 %v627
    %670 = vmatprep.subr.mxu0 0.0
    %671 = vmatpush1.msra.mxu0 %v626
    %672 = vmatprep.subr.mxu0 0.0
    %673 = vmatpush2.msra.mxu0 0.0
    %674 = vmatprep.subr.mxu0 0.0
    %675 = vmatpush2.msra.mxu0 0.0
    %676 = vmatprep.subr.mxu0 0.0
    %677 = vmatpush2.msra.mxu0 0.0
    %678 = vmatprep.subr.mxu0 0.0
    %679 = vmatpush2.msra.mxu0 0.0
    %680 = vmatprep.subr.mxu0 0.0
    %681 = vmatpush2.msra.mxu0 0.0
    %682 = vmatprep.subr.mxu0 0.0
    %683 = vmatpush2.msra.mxu0 0.0
    %684 = vmatprep.subr.mxu0 0.0
    %685 = vmatpush2.msra.mxu0 0.0
    %686 = vmatprep.subr.mxu0 0.0
    %687 = vmatpush2.msra.mxu0 0.0
    %688 = vmatprep.subr.mxu0 0.0
    %689 = vmatpush2.msra.mxu0 0.0
    %690 = vmatprep.subr.mxu0 0.0
    %691 = vmatpush2.msra.mxu0 0.0
    %692 = vmatprep.subr.mxu0 0.0
    %693 = vmatpush2.msra.mxu0 0.0
    %694 = vmatprep.subr.mxu0 0.0
    %695 = vmatpush2.msra.mxu0 0.0
    %696 = vmatprep.subr.mxu0 0.0
    %697 = vmatpush2.msra.mxu0 0.0
    %698 = vmatprep.subr.mxu0 0.0
    %699 = vmatpush2.msra.mxu0 0.0
    %700 = vmatprep.subr.mxu0 0.0
    %701 = vmatpush2.msra.mxu0 0.0
    %702 = vmatprep.subr.mxu0 0.0
    %703 = vmatpush2.msra.mxu0 0.0
    %704 = vmatprep.mubr.f32.mxu0 0.0
    %705 = vmatmul.mubr.f32.gmra.mxu0 %v638
    %v706 = vpop.f32.mrf.mxu0
    %v707 = vadd.f32 %v635, %v706
    %v708 = vpop.f32.mrf.mxu0
    %709 = vdwg.mxu0
    %v710 = vadd.f32 %v623, %v707
    %v711 = vxor.u32 %v710, 2147483648
    %v712 = vmul.f32 %v711, 1.442695
    %v713 = vpow.pop %v712
    %v714 = vadd.f32 %v713, 1.0
    %v715 = vrcp.pop %v714
    %v716 = vmul.f32 1.0, %v715
    %718 = vrot.lane.b32.xlu0 %v707, 64
    %v719 = vpop.permute.xlu0 %718
    %v721 = vmul.f32 %v716, %v719
    %723 = vrot.lane.b32.xlu0 %v721, 64
    %v724 = vpop.permute.xlu0 %723
    %v726 = vadd.f32 %v623, %v724
    %v727 = vtanh.pop %v726
    %v728 = vsub.f32 1.0, %v716
    %730 = vrot.lane.b32.xlu0 %v727, 96
    %v731 = vpop.permute.xlu0 %730
    %v733 = vmul.f32 %v728, %v731
    %734 = vrot.lane.b32.xlu0 %v536, 32
    %v735 = vpop.permute.xlu0 %734
    %v737 = vmul.f32 %v716, %v735
    %v738 = vadd.f32 %v733, %v737
    %740 = vrot.lane.b32.xlu0 %v738, 96
    %v741 = vpop.permute.xlu0 %740
    %vm743 = vcmask 254976
    %744 = vst.msk [vmem:[#allocation25] sm:$0x3] %vm743, %v741
    %v745 = vld [vmem:[%s242] sm:$0x3]
    %v746 = vld [vmem:[#allocation18] sm:$0xff]
    %v747 = vld [vmem:[#allocation18 + $0x8] sm:$0xff]
    %v748 = vld [vmem:[#allocation18 + $0x10] sm:$0xff]
    %v749 = vld [vmem:[#allocation18 + $0x18] sm:$0xff]
    %v750 = vld [vmem:[#allocation21] sm:$0x1]
    %v752 = vlaneseq
    %v753 = vshrl.u32 %v752, 7
    %v754 = vsub.s32 0, %v753
    %v755 = vrot.slane %v750, %v754
    %v757 = vsel %vm257, %v741, 0
    %759 = vmatprep.subr.mxu0 0.0
    %760 = vmatpush1.msra.mxu0 0.0
    %761 = vmatprep.subr.mxu0 0.0
    %762 = vmatpush1.msra.mxu0 0.0
    %763 = vmatprep.subr.mxu0 0.0
    %764 = vmatpush1.msra.mxu0 0.0
    %765 = vmatprep.subr.mxu0 0.0
    %766 = vmatpush1.msra.mxu0 0.0
    %767 = vmatprep.subr.mxu0 0.0
    %768 = vmatpush1.msra.mxu0 0.0
    %769 = vmatprep.subr.mxu0 0.0
    %770 = vmatpush1.msra.mxu0 0.0
    %771 = vmatprep.subr.mxu0 0.0
    %772 = vmatpush1.msra.mxu0 0.0
    %773 = vmatprep.subr.mxu0 0.0
    %774 = vmatpush1.msra.mxu0 0.0
    %775 = vmatprep.subr.mxu0 0.0
    %776 = vmatpush1.msra.mxu0 0.0
    %777 = vmatprep.subr.mxu0 0.0
    %778 = vmatpush1.msra.mxu0 0.0
    %779 = vmatprep.subr.mxu0 0.0
    %780 = vmatpush1.msra.mxu0 0.0
    %781 = vmatprep.subr.mxu0 0.0
    %782 = vmatpush1.msra.mxu0 0.0
    %783 = vmatprep.subr.mxu0 0.0
    %784 = vmatpush1.msra.mxu0 %v749
    %785 = vmatprep.subr.mxu0 0.0
    %786 = vmatpush1.msra.mxu0 %v748
    %787 = vmatprep.subr.mxu0 0.0
    %788 = vmatpush1.msra.mxu0 %v747
    %789 = vmatprep.subr.mxu0 0.0
    %790 = vmatpush1.msra.mxu0 %v746
    %791 = vmatprep.subr.mxu0 0.0
    %792 = vmatpush2.msra.mxu0 0.0
    %793 = vmatprep.subr.mxu0 0.0
    %794 = vmatpush2.msra.mxu0 0.0
    %795 = vmatprep.subr.mxu0 0.0
    %796 = vmatpush2.msra.mxu0 0.0
    %797 = vmatprep.subr.mxu0 0.0
    %798 = vmatpush2.msra.mxu0 0.0
    %799 = vmatprep.subr.mxu0 0.0
    %800 = vmatpush2.msra.mxu0 0.0
    %801 = vmatprep.subr.mxu0 0.0
    %802 = vmatpush2.msra.mxu0 0.0
    %803 = vmatprep.subr.mxu0 0.0
    %804 = vmatpush2.msra.mxu0 0.0
    %805 = vmatprep.subr.mxu0 0.0
    %806 = vmatpush2.msra.mxu0 0.0
    %807 = vmatprep.subr.mxu0 0.0
    %808 = vmatpush2.msra.mxu0 0.0
    %809 = vmatprep.subr.mxu0 0.0
    %810 = vmatpush2.msra.mxu0 0.0
    %811 = vmatprep.subr.mxu0 0.0
    %812 = vmatpush2.msra.mxu0 0.0
    %813 = vmatprep.subr.mxu0 0.0
    %814 = vmatpush2.msra.mxu0 0.0
    %815 = vmatprep.subr.mxu0 0.0
    %816 = vmatpush2.msra.mxu0 0.0
    %817 = vmatprep.subr.mxu0 0.0
    %818 = vmatpush2.msra.mxu0 0.0
    %819 = vmatprep.subr.mxu0 0.0
    %820 = vmatpush2.msra.mxu0 0.0
    %821 = vmatprep.subr.mxu0 0.0
    %822 = vmatpush2.msra.mxu0 0.0
    %823 = vmatprep.mubr.f32.mxu0 0.0
    %824 = vmatmul.mubr.f32.gmra.mxu0 %v757
    %v825 = vpop.f32.mrf.mxu0
    %v826 = vadd.f32 %v755, %v825
    %v827 = vpop.f32.mrf.mxu0
    %828 = vdwg.mxu0
    %v829 = vld [vmem:[#allocation19] sm:$0xff]
    %v830 = vld [vmem:[#allocation19 + $0x8] sm:$0xff]
    %v831 = vld [vmem:[#allocation19 + $0x10] sm:$0xff]
    %v832 = vld [vmem:[#allocation19 + $0x18] sm:$0xff]
    %v833 = vld [vmem:[#allocation22] sm:$0x1]
    %v835 = vlaneseq
    %v836 = vshrl.u32 %v835, 7
    %v837 = vsub.s32 0, %v836
    %v838 = vrot.slane %v833, %v837
    %v841 = vsel %vm257, %v745, 0
    %843 = vmatprep.subr.mxu0 0.0
    %844 = vmatpush1.msra.mxu0 0.0
    %845 = vmatprep.subr.mxu0 0.0
    %846 = vmatpush1.msra.mxu0 0.0
    %847 = vmatprep.subr.mxu0 0.0
    %848 = vmatpush1.msra.mxu0 0.0
    %849 = vmatprep.subr.mxu0 0.0
    %850 = vmatpush1.msra.mxu0 0.0
    %851 = vmatprep.subr.mxu0 0.0
    %852 = vmatpush1.msra.mxu0 0.0
    %853 = vmatprep.subr.mxu0 0.0
    %854 = vmatpush1.msra.mxu0 0.0
    %855 = vmatprep.subr.mxu0 0.0
    %856 = vmatpush1.msra.mxu0 0.0
    %857 = vmatprep.subr.mxu0 0.0
    %858 = vmatpush1.msra.mxu0 0.0
    %859 = vmatprep.subr.mxu0 0.0
    %860 = vmatpush1.msra.mxu0 0.0
    %861 = vmatprep.subr.mxu0 0.0
    %862 = vmatpush1.msra.mxu0 0.0
    %863 = vmatprep.subr.mxu0 0.0
    %864 = vmatpush1.msra.mxu0 0.0
    %865 = vmatprep.subr.mxu0 0.0
    %866 = vmatpush1.msra.mxu0 0.0
    %867 = vmatprep.subr.mxu0 0.0
    %868 = vmatpush1.msra.mxu0 %v832
    %869 = vmatprep.subr.mxu0 0.0
    %870 = vmatpush1.msra.mxu0 %v831
    %871 = vmatprep.subr.mxu0 0.0
    %872 = vmatpush1.msra.mxu0 %v830
    %873 = vmatprep.subr.mxu0 0.0
    %874 = vmatpush1.msra.mxu0 %v829
    %875 = vmatprep.subr.mxu0 0.0
    %876 = vmatpush2.msra.mxu0 0.0
    %877 = vmatprep.subr.mxu0 0.0
    %878 = vmatpush2.msra.mxu0 0.0
    %879 = vmatprep.subr.mxu0 0.0
    %880 = vmatpush2.msra.mxu0 0.0
    %881 = vmatprep.subr.mxu0 0.0
    %882 = vmatpush2.msra.mxu0 0.0
    %883 = vmatprep.subr.mxu0 0.0
    %884 = vmatpush2.msra.mxu0 0.0
    %885 = vmatprep.subr.mxu0 0.0
    %886 = vmatpush2.msra.mxu0 0.0
    %887 = vmatprep.subr.mxu0 0.0
    %888 = vmatpush2.msra.mxu0 0.0
    %889 = vmatprep.subr.mxu0 0.0
    %890 = vmatpush2.msra.mxu0 0.0
    %891 = vmatprep.subr.mxu0 0.0
    %892 = vmatpush2.msra.mxu0 0.0
    %893 = vmatprep.subr.mxu0 0.0
    %894 = vmatpush2.msra.mxu0 0.0
    %895 = vmatprep.subr.mxu0 0.0
    %896 = vmatpush2.msra.mxu0 0.0
    %897 = vmatprep.subr.mxu0 0.0
    %898 = vmatpush2.msra.mxu0 0.0
    %899 = vmatprep.subr.mxu0 0.0
    %900 = vmatpush2.msra.mxu0 0.0
    %901 = vmatprep.subr.mxu0 0.0
    %902 = vmatpush2.msra.mxu0 0.0
    %903 = vmatprep.subr.mxu0 0.0
    %904 = vmatpush2.msra.mxu0 0.0
    %905 = vmatprep.subr.mxu0 0.0
    %906 = vmatpush2.msra.mxu0 0.0
    %907 = vmatprep.mubr.f32.mxu0 0.0
    %908 = vmatmul.mubr.f32.gmra.mxu0 %v841
    %v909 = vpop.f32.mrf.mxu0
    %v910 = vadd.f32 %v838, %v909
    %v911 = vpop.f32.mrf.mxu0
    %912 = vdwg.mxu0
    %v913 = vadd.f32 %v826, %v910
    %v914 = vxor.u32 %v913, 2147483648
    %v915 = vmul.f32 %v914, 1.442695
    %v916 = vpow.pop %v915
    %v917 = vadd.f32 %v916, 1.0
    %v918 = vrcp.pop %v917
    %v919 = vmul.f32 1.0, %v918
    %921 = vrot.lane.b32.xlu0 %v910, 64
    %v922 = vpop.permute.xlu0 %921
    %v924 = vmul.f32 %v919, %v922
    %926 = vrot.lane.b32.xlu0 %v924, 64
    %v927 = vpop.permute.xlu0 %926
    %v929 = vadd.f32 %v826, %v927
    %v930 = vtanh.pop %v929
    %v931 = vsub.f32 1.0, %v919
    %933 = vrot.lane.b32.xlu0 %v930, 96
    %v934 = vpop.permute.xlu0 %933
    %v936 = vmul.f32 %v931, %v934
    %937 = vrot.lane.b32.xlu0 %v745, 32
    %v938 = vpop.permute.xlu0 %937
    %v940 = vmul.f32 %v919, %v938
    %v941 = vadd.f32 %v936, %v940
    %943 = vrot.lane.b32.xlu0 %v941, 96
    %v944 = vpop.permute.xlu0 %943
    %s946 = scalar_lea.vmem [#allocation25], 2
    %947 = vst.msk [vmem:[%s946] sm:$0x3] %vm743, %v944
    %948 = vrot.lane.b32.xlu0 %v941, 32
    %v949 = vpop.permute.xlu0 %948
    %v951 = vsel %vm552, %v535, %v949
    %v952 = vld [vmem:[%s17] sm:$0xff]
    %v953 = vld [vmem:[%s17 + $0x8] sm:$0xff]
    %v954 = vld [vmem:[%s17 + $0x10] sm:$0xff]
    %v955 = vld [vmem:[%s17 + $0x18] sm:$0xff]
    %v956 = vld [vmem:[%s17 + $0x20] sm:$0xff]
    %v957 = vld [vmem:[%s17 + $0x28] sm:$0xff]
    %v958 = vld [vmem:[%s17 + $0x30] sm:$0xff]
    %v959 = vld [vmem:[%s17 + $0x38] sm:$0xff]
    %v960 = vld [vmem:[%s17 + $0x40] sm:$0xff]
    %v961 = vld [vmem:[%s17 + $0x48] sm:$0xff]
    %v962 = vld [vmem:[%s17 + $0x50] sm:$0xff]
    %v963 = vld [vmem:[%s17 + $0x58] sm:$0xff]
    %v964 = vld [vmem:[%s18] sm:$0x1]
    %v966 = vlaneseq
    %v967 = vshrl.u32 %v966, 7
    %v968 = vsub.s32 0, %v967
    %v969 = vrot.slane %v964, %v968
    %vm971 = vcmask 785408
    %v973 = vsel %vm971, %v951, 0
    %975 = vmatprep.subr.mxu0 0.0
    %976 = vmatpush1.msra.mxu0 0.0
    %977 = vmatprep.subr.mxu0 0.0
    %978 = vmatpush1.msra.mxu0 0.0
    %979 = vmatprep.subr.mxu0 0.0
    %980 = vmatpush1.msra.mxu0 0.0
    %981 = vmatprep.subr.mxu0 0.0
    %982 = vmatpush1.msra.mxu0 0.0
    %983 = vmatprep.subr.mxu0 0.0
    %984 = vmatpush1.msra.mxu0 %v963
    %985 = vmatprep.subr.mxu0 0.0
    %986 = vmatpush1.msra.mxu0 %v962
    %987 = vmatprep.subr.mxu0 0.0
    %988 = vmatpush1.msra.mxu0 %v961
    %989 = vmatprep.subr.mxu0 0.0
    %990 = vmatpush1.msra.mxu0 %v960
    %991 = vmatprep.subr.mxu0 0.0
    %992 = vmatpush1.msra.mxu0 %v959
    %993 = vmatprep.subr.mxu0 0.0
    %994 = vmatpush1.msra.mxu0 %v958
    %995 = vmatprep.subr.mxu0 0.0
    %996 = vmatpush1.msra.mxu0 %v957
    %997 = vmatprep.subr.mxu0 0.0
    %998 = vmatpush1.msra.mxu0 %v956
    %999 = vmatprep.subr.mxu0 0.0
    %1000 = vmatpush1.msra.mxu0 %v955
    %1001 = vmatprep.subr.mxu0 0.0
    %1002 = vmatpush1.msra.mxu0 %v954
    %1003 = vmatprep.subr.mxu0 0.0
    %1004 = vmatpush1.msra.mxu0 %v953
    %1005 = vmatprep.subr.mxu0 0.0
    %1006 = vmatpush1.msra.mxu0 %v952
    %1007 = vmatprep.subr.mxu0 0.0
    %1008 = vmatpush2.msra.mxu0 0.0
    %1009 = vmatprep.subr.mxu0 0.0
    %1010 = vmatpush2.msra.mxu0 0.0
    %1011 = vmatprep.subr.mxu0 0.0
    %1012 = vmatpush2.msra.mxu0 0.0
    %1013 = vmatprep.subr.mxu0 0.0
    %1014 = vmatpush2.msra.mxu0 0.0
    %1015 = vmatprep.subr.mxu0 0.0
    %1016 = vmatpush2.msra.mxu0 0.0
    %1017 = vmatprep.subr.mxu0 0.0
    %1018 = vmatpush2.msra.mxu0 0.0
    %1019 = vmatprep.subr.mxu0 0.0
    %1020 = vmatpush2.msra.mxu0 0.0
    %1021 = vmatprep.subr.mxu0 0.0
    %1022 = vmatpush2.msra.mxu0 0.0
    %1023 = vmatprep.subr.mxu0 0.0
    %1024 = vmatpush2.msra.mxu0 0.0
    %1025 = vmatprep.subr.mxu0 0.0
    %1026 = vmatpush2.msra.mxu0 0.0
    %1027 = vmatprep.subr.mxu0 0.0
    %1028 = vmatpush2.msra.mxu0 0.0
    %1029 = vmatprep.subr.mxu0 0.0
    %1030 = vmatpush2.msra.mxu0 0.0
    %1031 = vmatprep.subr.mxu0 0.0
    %1032 = vmatpush2.msra.mxu0 0.0
    %1033 = vmatprep.subr.mxu0 0.0
    %1034 = vmatpush2.msra.mxu0 0.0
    %1035 = vmatprep.subr.mxu0 0.0
    %1036 = vmatpush2.msra.mxu0 0.0
    %1037 = vmatprep.subr.mxu0 0.0
    %1038 = vmatpush2.msra.mxu0 0.0
    %1039 = vmatprep.mubr.f32.mxu0 0.0
    %1040 = vmatmul.mubr.f32.gmra.mxu0 %v973
    %v1041 = vpop.f32.mrf.mxu0
    %v1042 = vadd.f32 %v969, %v1041
    %v1043 = vpop.f32.mrf.mxu0
    %1044 = vdwg.mxu0
    %1045 = vst [vmem:[#allocation24] sm:$0x3] %v1042
    // Predicated region
    $region130: #{tpu_custom_call.1} parent=1 // pred_check
      _
    $region131: #{tpu_custom_call.1} parent=1 // pred_check_branch
      %1047 = sbr.rel (0) target = $region133
    $region132: #{tpu_custom_call.1} parent=1 // pred_region
      %s1049 = ssub.s32 32, 32
      %1050 = vsyncadd [#allocation4], %s1049
      %s1052 = sshll.u32 [#allocation24], 4
      %s1053 = int_to_ptr.vmem [resolvable:$true] %s1052
      %1055 = dma.vmem_to_hbm [thread:$0]  %s1053, 32, %s19, [#allocation4]
    $region133: #{tpu_custom_call.1} parent=1 // pred_fallthru
      _
    // Predicated region
    $region134: #{tpu_custom_call.1} parent=1 // pred_check
      _
    $region135: #{tpu_custom_call.1} parent=1 // pred_check_branch
      %1057 = sbr.rel (0) target = $region137
    $region136: #{tpu_custom_call.1} parent=1 // pred_region
      %s1059 = ssub.s32 64, 64
      %1060 = vsyncadd [#allocation26], %s1059
      %s1061 = sshll.u32 [#allocation25], 4
      %s1062 = int_to_ptr.vmem [resolvable:$true] %s1061
      %1067 = dma.vmem_to_hbm [thread:$0]  %s1062, 64, %s20, [#allocation26], 32, 32, 2
    $region137: #{tpu_custom_call.1} parent=1 // pred_fallthru
      _
    // Predicated region
    $region138: #{tpu_custom_call.1} parent=1 // pred_check
      _
    $region139: #{tpu_custom_call.1} parent=1 // pred_check_branch
      %1069 = sbr.rel (0) target = $region141
    $region140: #{tpu_custom_call.1} parent=1 // pred_region
      %s1071 = ssub.s32 32, 32
      %1072 = vsyncadd [#allocation26], %s1071
      %s1074 = sshll.u32 [#allocation27], 4
      %s1075 = int_to_ptr.vmem [resolvable:$true] %s1074
      %1077 = dma.vmem_to_hbm [thread:$0]  %s1075, 32, %s21, [#allocation26]
    $region141: #{tpu_custom_call.1} parent=1 // pred_fallthru
      _
    // Predicated region
    $region142: #{tpu_custom_call.1} parent=1 // pred_check
      _
    $region143: #{tpu_custom_call.1} parent=1 // pred_check_branch
      %1079 = sbr.rel (0) target = $region145
    $region144: #{tpu_custom_call.1} parent=1 // pred_region
      %1080 = dma.done [#allocation4], 32
    $region145: #{tpu_custom_call.1} parent=1 // pred_fallthru
      _
    // Predicated region
    $region146: #{tpu_custom_call.1} parent=1 // pred_check
      _
    $region147: #{tpu_custom_call.1} parent=1 // pred_check_branch
      %1082 = sbr.rel (0) target = $region149
    $region148: #{tpu_custom_call.1} parent=1 // pred_region
      %1083 = dma.done [#allocation26], 64
    $region149: #{tpu_custom_call.1} parent=1 // pred_fallthru
      _
    // Predicated region
    $region150: #{tpu_custom_call.1} parent=1 // pred_check
      _
    $region151: #{tpu_custom_call.1} parent=1 // pred_check_branch
      %1085 = sbr.rel (0) target = $region153
    $region152: #{tpu_custom_call.1} parent=1 // pred_region
      %1086 = dma.done [#allocation26], 32
    $region153: #{tpu_custom_call.1} parent=1 // pred_fallthru
      _
    %1087 = vsyncpa [#allocation3], 1
    %1088 = vsyncpa [#allocation8], 1
    %1089 = vsyncpa [#allocation11], 1
    %1090 = vsyncpa [#allocation14], 1
    %1091 = vsyncpa [#allocation17], 1
    %1092 = vsyncpa [#allocation20], 1
    %1093 = vsyncpa [#allocation23], 1
    %1094 = vsyncpa [#allocation4], 1
    %1095 = vsyncpa [#allocation26], 1
    %1096 = vsyncpa [#allocation5], 1

</llo_original>
